<compile_context>
chip_gen: v7x
topology: tpu7x:2x2x1
jax: 0.10.0
libtpu: 0.0.40
codegen_flags: <defaults>
</compile_context>

<pallas_src>
import functools
import numpy as np
import jax
import jax.numpy as jnp
from jax.experimental import pallas as pl
from jax.experimental.pallas import tpu as pltpu


def _round_up(x, m):
    return ((x + m - 1) // m) * m


# ---------------------------------------------------------------------------
# anchor base (plain numpy glue, mirrors get_anchor_base + clip_boxes_to_image)
# ---------------------------------------------------------------------------
def get_anchor_base(out_size, ratios, scales):
    anc_x = np.arange(out_size, dtype=np.float32) + 0.5
    anc_y = np.arange(out_size, dtype=np.float32) + 0.5
    n_anchors = len(ratios) * len(scales)
    anc_base = np.zeros((1, out_size, out_size, n_anchors, 4), np.float32)
    for i, ix in enumerate(anc_x):
        for j, iy in enumerate(anc_y):
            boxes = []
            for ratio in ratios:
                for scale in scales:
                    w = scale * ratio
                    h = scale
                    boxes.append([ix - w / 2, iy - h / 2, ix + w / 2, iy + h / 2])
            boxes = np.array(boxes, np.float32)
            # torchvision.ops.clip_boxes_to_image with size=(out_size, out_size)
            boxes = np.clip(boxes, 0.0, float(out_size))
            anc_base[0, i, j] = boxes
    return anc_base


# ---------------------------------------------------------------------------
# Fused Pallas kernel:
#   conv3x3 + both 1x1 heads  ->  ONE folded bf16 MXU matmul (f32 accumulation)
#   anchor-vs-GT IoU + pos/neg masks (VPU/XLU filler, grid step 0 only)
# ---------------------------------------------------------------------------
def _rpn_fused_kernel(patch_ref, w_ref, b_ref, anc_ref, gt_ref,
                      head_ref, iou_ref, *, scale, pos_thr, neg_thr):
    # patch_ref: (tile_M, 9C)  bf16  folded-batch im2col rows for this tile
    # w_ref:     (9C, 128)     bf16  folded [conv@cls | conv@box] weight (lane-pad)
    # b_ref:     (1, 128)      f32   folded bias (lane-padded)
    # anc_ref:   (4, N_pad)    f32   anchors as rows x1,y1,x2,y2 (zero-pad lanes)
    # gt_ref:    (G_pad, 4)    f32   all GT boxes, pixel coords, -1 padded rows
    # head_ref:  (tile_M, 128) bf16  [cls | box | zero-pad]
    # iou_ref:   (1, 3, G_pad, N_pad) f32  stacked [iou, pos, neg] for this tile

    # ---- fused conv3x3 + 1x1 heads: single MXU matmul, f32 accumulation ----
    head = jnp.dot(patch_ref[...], w_ref[...], preferred_element_type=jnp.float32)
    head_ref[...] = (head + b_ref[...]).astype(head_ref.dtype)

    # ---- anchor-vs-GT IoU + masks. Only tile 0 computes it; every tile has
    #      its own output block so the parallel grid axis stays race-free. ----
    @pl.when(pl.program_id(0) == 0)
    def _():
        anc = anc_ref[...]                                       # (4, N_pad)
        gt_px = gt_ref[...]                                      # (G_pad, 4)
        # project_bboxes(..., mode='p2a'): pixel -> activation coords, keep -1 pads
        gt = jnp.where(gt_px < 0, gt_px, gt_px / scale)

        ax1, ay1, ax2, ay2 = anc[0:1, :], anc[1:2, :], anc[2:3, :], anc[3:4, :]
        gx1, gy1 = gt[:, 0:1], gt[:, 1:2]
        gx2, gy2 = gt[:, 2:3], gt[:, 3:4]

        ix1 = jnp.maximum(ax1, gx1)
        iy1 = jnp.maximum(ay1, gy1)
        ix2 = jnp.minimum(ax2, gx2)
        iy2 = jnp.minimum(ay2, gy2)
        inter = jnp.maximum(ix2 - ix1, 0.0) * jnp.maximum(iy2 - iy1, 0.0)   # (G, N)
        area_a = (ax2 - ax1) * (ay2 - ay1)                                  # (1, N)
        area_g = (gx2 - gx1) * (gy2 - gy1)                                  # (G, 1)
        iou = inter / jnp.maximum(area_a + area_g - inter, 1e-8)            # (G, N)

        max_per_gt = jnp.max(iou, axis=1, keepdims=True)                    # (G, 1)
        pos = jnp.logical_or(
            iou > pos_thr,
            jnp.logical_and(iou == max_per_gt, max_per_gt > 0.0))

        iou_ref[0, 0] = iou
        iou_ref[0, 1] = jnp.where(pos, 1.0, 0.0)
        iou_ref[0, 2] = jnp.where(iou < neg_thr, 1.0, 0.0)


# ---------------------------------------------------------------------------
# plain-JAX glue: im2col for a 3x3 stride-1 valid conv (NHWC), batch folded
# ---------------------------------------------------------------------------
def _im2col_3x3(x_nhwc):
    N, H, W, C = x_nhwc.shape
    Ho, Wo = H - 2, W - 2
    cols = []
    for kh in range(3):
        for kw in range(3):
            cols.append(x_nhwc[:, kh:kh + Ho, kw:kw + Wo, :])
    patches = jnp.concatenate(cols, axis=-1)          # (N, Ho, Wo, 9C)
    return patches.reshape(N * Ho * Wo, 9 * C)        # batch folded into M


class RegionProposeNetworkPallas:
    def __init__(self, image_size, out_size, feature_size,
                 anchor_scale, anchor_ratio,
                 pos_threshold=0.7, neg_threshold=0.3, *, key):
        self.image_size = image_size
        self.feature_size = feature_size
        self.anchor_scale = anchor_scale
        self.anchor_ratio = anchor_ratio
        self.pos_threshold, self.neg_threshold = pos_threshold, neg_threshold
        self.w_conf, self.w_reg = 1, 5

        C = feature_size
        self.n_anchors = len(anchor_scale) * len(anchor_ratio)
        self.n_cls = 1 * self.n_anchors
        self.n_boxes = 4 * self.n_anchors

        k1, k2, k3, k4, k5, k6 = jax.random.split(key, 6)
        # conv (3x3) weight stored as (kh, kw, Cin, Cout) == transpose of
        # PyTorch (Cout, Cin, kh, kw); same math, documented layout choice.
        self.w3 = jax.random.normal(k1, (3, 3, C, C), jnp.float32) / np.sqrt(9 * C)
        self.b3 = jax.random.normal(k2, (1, C), jnp.float32) * 0.01
        self.wc = jax.random.normal(k3, (C, self.n_cls), jnp.float32) / np.sqrt(C)
        self.bc = jax.random.normal(k4, (1, self.n_cls), jnp.float32) * 0.01
        self.wb = jax.random.normal(k5, (C, self.n_boxes), jnp.float32) / np.sqrt(C)
        self.bb = jax.random.normal(k6, (1, self.n_boxes), jnp.float32) * 0.01

        # ---- fold conv3x3 + both 1x1 heads into ONE matmul (no ReLU between) ----
        # TODO(synk): at large C (K=9C >> 288) keep the fused weight in f32 or use
        # higher-precision matmul; bf16 fold error grows ~sqrt(K).
        w3_mat = self.w3.reshape(9 * C, C)
        w_fused = jnp.concatenate([w3_mat @ self.wc, w3_mat @ self.wb], axis=1)
        b_fused = jnp.concatenate([self.b3 @ self.wc + self.bc,
                                   self.b3 @ self.wb + self.bb], axis=1)
        self.n_out = self.n_cls + self.n_boxes
        self.n_out_pad = max(128, _round_up(self.n_out, 128))
        pad = self.n_out_pad - self.n_out
        # lane-pad to 128 output columns -> unmasked lane-dense stores
        self.w_fused_bf16 = jnp.pad(w_fused, ((0, 0), (0, pad))).astype(jnp.bfloat16)
        self.b_fused = jnp.pad(b_fused, ((0, 0), (0, pad)))

        # anchors on the post-conv (out_size-2) grid; shared across the batch
        self.out_hw = out_size - 2
        anc_base = get_anchor_base(self.out_hw, self.anchor_ratio, self.anchor_scale)
        anchors = anc_base.reshape(-1, 4)                        # (N, 4) numpy
        self.n_anc = anchors.shape[0]
        self.n_anc_pad = _round_up(self.n_anc, 128)              # lane-dense IoU rows
        anchors_t_pad = np.zeros((4, self.n_anc_pad), np.float32)
        anchors_t_pad[:, :self.n_anc] = anchors.T                # zero-area dummy pads
        self.anchors = jnp.asarray(anchors)                      # (N, 4)
        self.anchors_t_pad = jnp.asarray(anchors_t_pad)          # (4, N_pad)

    # -------------------------------------------------------------------
    def __call__(self, features_nchw, gt_boxes):
        B, C, H, W = features_nchw.shape
        Ho, Wo = H - 2, W - 2
        P = Ho * Wo
        assert Ho == self.out_hw and Wo == self.out_hw
        G = gt_boxes.shape[1]
        K9 = 9 * C
        NP = self.n_out_pad
        N = self.n_anc
        N_pad = self.n_anc_pad

        # ---- im2col with batch folded into M + bf16 cast (fuses in XLA) -----
        x_nhwc = jnp.transpose(features_nchw, (0, 2, 3, 1))
        patches = _im2col_3x3(x_nhwc).astype(jnp.bfloat16)       # (B*P, 9C) bf16

        # ---- M row-tiling: 16-aligned rows (bf16 sublane pack); >=2 tiles so
        #      v7x's two TensorCores both get work; ~512-row tiles for big maps.
        BP = B * P
        ROW_ALIGN = 16
        n_tiles = max(1, -(-BP // 512))
        if n_tiles == 1 and BP >= 2 * ROW_ALIGN:
            n_tiles = 2
        tile_M = _round_up(-(-BP // n_tiles), ROW_ALIGN)
        BP_pad = tile_M * n_tiles
        if BP_pad != BP:
            patches = jnp.pad(patches, ((0, BP_pad - BP), (0, 0)))

        # ---- GT boxes folded across batch, padded to a multiple of 8 rows ---
        BG = B * G
        BG_pad = _round_up(max(BG, 8), 8)
        gt_flat = gt_boxes.reshape(BG, 4).astype(jnp.float32)
        if BG_pad != BG:
            gt_flat = jnp.pad(gt_flat, ((0, BG_pad - BG), (0, 0)),
                              constant_values=-1.0)

        scale_factor = self.image_size // Wo                     # matches PyTorch //

        kernel = functools.partial(
            _rpn_fused_kernel,
            scale=float(scale_factor),
            pos_thr=float(self.pos_threshold),
            neg_thr=float(self.neg_threshold))

        head_pad, iou_stack = pl.pallas_call(
            kernel,
            out_shape=(jax.ShapeDtypeStruct((BP_pad, NP), jnp.bfloat16),
                       jax.ShapeDtypeStruct((n_tiles, 3, BG_pad, N_pad),
                                            jnp.float32)),
            grid=(n_tiles,),
            in_specs=[
                pl.BlockSpec((tile_M, K9), lambda t: (t, 0)),    # patches (bf16)
                pl.BlockSpec((K9, NP), lambda t: (0, 0)),        # fused weight (bf16)
                pl.BlockSpec((1, NP), lambda t: (0, 0)),         # fused bias (f32)
                pl.BlockSpec((4, N_pad), lambda t: (0, 0)),      # anchors, shared
                pl.BlockSpec((BG_pad, 4), lambda t: (0, 0)),     # GT boxes (pixel)
            ],
            out_specs=(pl.BlockSpec((tile_M, NP), lambda t: (t, 0)),
                       pl.BlockSpec((1, 3, BG_pad, N_pad),
                                    lambda t: (t, 0, 0, 0))),
            compiler_params=pltpu.CompilerParams(
                dimension_semantics=("parallel",)),
        )(patches, self.w_fused_bf16, self.b_fused, self.anchors_t_pad, gt_flat)

        # ---- unpad; ONE transpose for the head, ONE for the IoU stack -------
        head = head_pad[:BP, :self.n_out].astype(jnp.float32)    # (B*P, n_out)
        head = jnp.transpose(head.reshape(B, Ho, Wo, self.n_out), (0, 3, 1, 2))
        _cls = head[:, :self.n_cls]                              # (B, n_cls, Ho, Wo)
        _boxes = head[:, self.n_cls:]                            # (B, n_boxes, Ho, Wo)

        stacked = iou_stack[0, :, :BG, :N].reshape(3, B, G, N)
        stacked = jnp.transpose(stacked, (0, 1, 3, 2))           # (3, B, N, G)
        iou_metric = stacked[0]
        pos_mask = stacked[1] > 0.5
        neg_mask = stacked[2] > 0.5
        anchors_flat = jnp.broadcast_to(self.anchors[None], (B, N, 4))

        # TODO(synk): torch.where dynamic-shape gathers (pos/neg anchor indices),
        # torch.randint negative sampling, generate_proposals / calc_gt_offsets and
        # calc_cls_loss / calc_bbox_reg_loss (definitions not provided) are
        # data-dependent-shape ops with no static-shape Pallas equivalent.
        return {
            "cls": _cls,                 # (B, n_anchors, Ho, Wo)   == PyTorch _cls
            "boxes": _boxes,             # (B, 4*n_anchors, Ho, Wo) == PyTorch _boxes
            "iou_metric": iou_metric,    # (B, N_anchors, N_gt)
            "pos_mask": pos_mask,
            "neg_mask": neg_mask,
            "anchors": anchors_flat,
        }


# ---------------------------------------------------------------------------
if __name__ == "__main__":
    key = jax.random.PRNGKey(0)
    k_param, k_feat, k_gt1, k_gt2 = jax.random.split(key, 4)

    # small shapes consistent with the module
    B, C, H, W = 2, 32, 16, 16          # features: (batch, feature_size, 16, 16)
    image_size = 64
    G = 4                               # gt boxes per image

    features = jax.random.normal(k_feat, (B, C, H, W), jnp.float32)

    # deterministic GT boxes in pixel coords (xmin, ymin, xmax, ymax)
    xy = jax.random.uniform(k_gt1, (B, G, 2), minval=4.0, maxval=40.0)
    wh = jax.random.uniform(k_gt2, (B, G, 2), minval=8.0, maxval=20.0)
    gt_boxes = jnp.concatenate(
        [xy, jnp.minimum(xy + wh, float(image_size))], axis=-1)

    rpn = RegionProposeNetworkPallas(
        image_size=image_size, out_size=H, feature_size=C,
        anchor_scale=[2.0, 4.0], anchor_ratio=[0.5, 1.0], key=k_param)

    fwd = jax.jit(rpn.__call__)
    out = fwd(features, gt_boxes)
    out = jax.block_until_ready(out)

    # --- correctness cross-check 1: cls head vs plain-XLA f32 conv pipeline ---
    dn = jax.lax.conv_dimension_numbers(features.shape, (C, C, 3, 3),
                                        ("NCHW", "OIHW", "NCHW"))
    w3_oihw = jnp.transpose(rpn.w3, (3, 2, 0, 1))
    hid_ref = jax.lax.conv_general_dilated(
        features, w3_oihw, (1, 1), "VALID", dimension_numbers=dn)
    hid_ref = hid_ref + rpn.b3.reshape(1, C, 1, 1)
    cls_ref = jax.lax.conv_general_dilated(
        hid_ref, jnp.transpose(rpn.wc, (1, 0))[:, :, None, None],
        (1, 1), "VALID", dimension_numbers=dn) + rpn.bc.reshape(1, -1, 1, 1)
    assert jnp.allclose(out["cls"], cls_ref, atol=3e-2, rtol=3e-2), "cls head mismatch"

    # --- correctness cross-check 2: IoU vs plain-jnp reference -----------------
    scale_factor = image_size // (W - 2)
    gt_act = jnp.where(gt_boxes < 0, gt_boxes, gt_boxes / float(scale_factor))
    a = rpn.anchors[None, :, None, :]                # (1, N, 1, 4)
    g = gt_act[:, None, :, :]                        # (B, 1, G, 4)
    ix1 = jnp.maximum(a[..., 0], g[..., 0]); iy1 = jnp.maximum(a[..., 1], g[..., 1])
    ix2 = jnp.minimum(a[..., 2], g[..., 2]); iy2 = jnp.minimum(a[..., 3], g[..., 3])
    inter = jnp.maximum(ix2 - ix1, 0.0) * jnp.maximum(iy2 - iy1, 0.0)
    area_a = (a[..., 2] - a[..., 0]) * (a[..., 3] - a[..., 1])
    area_g = (g[..., 2] - g[..., 0]) * (g[..., 3] - g[..., 1])
    iou_ref = inter / jnp.maximum(area_a + area_g - inter, 1e-8)   # (B, N, G)
    assert jnp.allclose(out["iou_metric"], iou_ref, atol=1e-4, rtol=1e-4), "iou mismatch"

    print("KERNEL_OK")
</pallas_src>

<mosaic_0001>
module attributes {stable_mosaic.version = 11 : i64} {
  func.func @_rpn_fused_kernel(%arg0: i32, %arg1: memref<208x288xbf16, #tpu.memory_space<vmem>>, %arg2: memref<288x128xbf16, #tpu.memory_space<vmem>>, %arg3: memref<1x128xf32, #tpu.memory_space<vmem>>, %arg4: memref<4x896xf32, #tpu.memory_space<vmem>>, %arg5: memref<8x4xf32, #tpu.memory_space<vmem>>, %arg6: memref<208x128xbf16, #tpu.memory_space<vmem>>, %arg7: memref<1x3x8x896xf32, #tpu.memory_space<vmem>>) attributes {dimension_semantics = [#tpu.dimension_semantics<parallel>], iteration_bounds = array<i64: 2>, scalar_prefetch = 0 : i64, scratch_operands = 0 : i64, tpu.core_type = #tpu.core_type<tc>, window_params = [{transform_indices = @transform_0, window_bounds = array<i64: 208, 288>}, {pipeline_mode = #tpu.pipeline_mode<synchronous>, transform_indices = @transform_1, window_bounds = array<i64: 288, 128>}, {pipeline_mode = #tpu.pipeline_mode<synchronous>, transform_indices = @transform_2, window_bounds = array<i64: 1, 128>}, {pipeline_mode = #tpu.pipeline_mode<synchronous>, transform_indices = @transform_3, window_bounds = array<i64: 4, 896>}, {pipeline_mode = #tpu.pipeline_mode<synchronous>, transform_indices = @transform_4, window_bounds = array<i64: 8, 4>}, {transform_indices = @transform_5, window_bounds = array<i64: 208, 128>}, {transform_indices = @transform_6, window_bounds = array<i64: 1, 3, 8, 896>}]} {
    %c0 = arith.constant 0 : index
    %c0_0 = arith.constant 0 : index
    %0 = vector.load %arg1[%c0, %c0_0] : memref<208x288xbf16, #tpu.memory_space<vmem>>, vector<208x288xbf16>
    %c0_1 = arith.constant 0 : index
    %c0_2 = arith.constant 0 : index
    %1 = vector.load %arg2[%c0_1, %c0_2] : memref<288x128xbf16, #tpu.memory_space<vmem>>, vector<288x128xbf16>
    %cst = arith.constant dense<0.000000e+00> : vector<208x128xf32>
    %2 = tpu.matmul %0, %1, %cst {dimension_numbers = #tpu.dot_dimension_numbers<[1], [0], [0], [1], [0, 0, 1, 1], [], []>} : vector<208x288xbf16>, vector<288x128xbf16>, vector<208x128xf32> -> vector<208x128xf32>
    %c0_3 = arith.constant 0 : index
    %c0_4 = arith.constant 0 : index
    %3 = vector.load %arg3[%c0_3, %c0_4] : memref<1x128xf32, #tpu.memory_space<vmem>>, vector<1x128xf32>
    %4 = vector.broadcast %3 : vector<1x128xf32> to vector<208x128xf32>
    %5 = arith.addf %2, %4 : vector<208x128xf32>
    %6 = arith.truncf %5 : vector<208x128xf32> to vector<208x128xbf16>
    %c0_5 = arith.constant 0 : index
    %c0_6 = arith.constant 0 : index
    %7 = vector.load %arg6[%c0_5, %c0_6] : memref<208x128xbf16, #tpu.memory_space<vmem>>, vector<208x128xbf16>
    tpu.vector_store %arg6[%c0_5, %c0_6], %6 {strides = array<i32>} : memref<208x128xbf16, #tpu.memory_space<vmem>>, vector<208x128xbf16>,
    %c0_i32 = arith.constant 0 : i32
    %8 = arith.cmpi eq, %arg0, %c0_i32 : i32
    %9 = arith.extui %8 : i1 to i32
    %c0_i32_7 = arith.constant 0 : i32
    %10 = arith.cmpi ne, %9, %c0_i32_7 : i32
    scf.if %10 {
      %c0_8 = arith.constant 0 : index
      %c0_9 = arith.constant 0 : index
      %11 = vector.load %arg4[%c0_8, %c0_9] : memref<4x896xf32, #tpu.memory_space<vmem>>, vector<4x896xf32>
      %c0_10 = arith.constant 0 : index
      %c0_11 = arith.constant 0 : index
      %12 = vector.load %arg5[%c0_10, %c0_11] : memref<8x4xf32, #tpu.memory_space<vmem>>, vector<8x4xf32>
      %cst_12 = arith.constant 0.000000e+00 : f32
      %13 = vector.broadcast %cst_12 : f32 to vector<8x4xf32>
      %14 = arith.cmpf olt, %12, %13 : vector<8x4xf32>
      %cst_13 = arith.constant 4.000000e+00 : f32
      %15 = vector.broadcast %cst_13 : f32 to vector<8x4xf32>
      %16 = arith.divf %12, %15 : vector<8x4xf32>
      %17 = arith.select %14, %12, %16 : vector<8x4xi1>, vector<8x4xf32>
      %18 = vector.extract_strided_slice %11 {offsets = [0, 0], sizes = [1, 896], strides = [1, 1]} : vector<4x896xf32> to vector<1x896xf32>
      %19 = vector.extract_strided_slice %11 {offsets = [1, 0], sizes = [1, 896], strides = [1, 1]} : vector<4x896xf32> to vector<1x896xf32>
      %20 = vector.extract_strided_slice %11 {offsets = [2, 0], sizes = [1, 896], strides = [1, 1]} : vector<4x896xf32> to vector<1x896xf32>
      %21 = vector.extract_strided_slice %11 {offsets = [3, 0], sizes = [1, 896], strides = [1, 1]} : vector<4x896xf32> to vector<1x896xf32>
      %22 = vector.extract_strided_slice %17 {offsets = [0, 0], sizes = [8, 1], strides = [1, 1]} : vector<8x4xf32> to vector<8x1xf32>
      %23 = vector.extract_strided_slice %17 {offsets = [0, 1], sizes = [8, 1], strides = [1, 1]} : vector<8x4xf32> to vector<8x1xf32>
      %24 = vector.extract_strided_slice %17 {offsets = [0, 2], sizes = [8, 1], strides = [1, 1]} : vector<8x4xf32> to vector<8x1xf32>
      %25 = vector.extract_strided_slice %17 {offsets = [0, 3], sizes = [8, 1], strides = [1, 1]} : vector<8x4xf32> to vector<8x1xf32>
      %26 = vector.broadcast %18 : vector<1x896xf32> to vector<8x896xf32>
      %27 = vector.broadcast %22 : vector<8x1xf32> to vector<8x896xf32>
      %28 = arith.maximumf %26, %27 : vector<8x896xf32>
      %29 = vector.broadcast %19 : vector<1x896xf32> to vector<8x896xf32>
      %30 = vector.broadcast %23 : vector<8x1xf32> to vector<8x896xf32>
      %31 = arith.maximumf %29, %30 : vector<8x896xf32>
      %32 = vector.broadcast %20 : vector<1x896xf32> to vector<8x896xf32>
      %33 = vector.broadcast %24 : vector<8x1xf32> to vector<8x896xf32>
      %34 = arith.minimumf %32, %33 : vector<8x896xf32>
      %35 = vector.broadcast %21 : vector<1x896xf32> to vector<8x896xf32>
      %36 = vector.broadcast %25 : vector<8x1xf32> to vector<8x896xf32>
      %37 = arith.minimumf %35, %36 : vector<8x896xf32>
      %38 = arith.subf %34, %28 : vector<8x896xf32>
      %cst_14 = arith.constant 0.000000e+00 : f32
      %39 = vector.broadcast %cst_14 : f32 to vector<8x896xf32>
      %40 = arith.maximumf %38, %39 : vector<8x896xf32>
      %41 = arith.subf %37, %31 : vector<8x896xf32>
      %cst_15 = arith.constant 0.000000e+00 : f32
      %42 = vector.broadcast %cst_15 : f32 to vector<8x896xf32>
      %43 = arith.maximumf %41, %42 : vector<8x896xf32>
      %44 = arith.mulf %40, %43 : vector<8x896xf32>
      %45 = arith.subf %20, %18 : vector<1x896xf32>
      %46 = arith.subf %21, %19 : vector<1x896xf32>
      %47 = arith.mulf %45, %46 : vector<1x896xf32>
      %48 = arith.subf %24, %22 : vector<8x1xf32>
      %49 = arith.subf %25, %23 : vector<8x1xf32>
      %50 = arith.mulf %48, %49 : vector<8x1xf32>
      %51 = vector.broadcast %47 : vector<1x896xf32> to vector<8x896xf32>
      %52 = vector.broadcast %50 : vector<8x1xf32> to vector<8x896xf32>
      %53 = arith.addf %51, %52 : vector<8x896xf32>
      %54 = arith.subf %53, %44 : vector<8x896xf32>
      %cst_16 = arith.constant 9.99999993E-9 : f32
      %55 = vector.broadcast %cst_16 : f32 to vector<8x896xf32>
      %56 = arith.maximumf %54, %55 : vector<8x896xf32>
      %57 = arith.divf %44, %56 : vector<8x896xf32>
      %cst_17 = arith.constant dense<0xFF800000> : vector<8xf32>
      %58 = vector.multi_reduction <maximumf>, %57, %cst_17 [1] : vector<8x896xf32> to vector<8xf32>
      %59 = vector.shape_cast %58 : vector<8xf32> to vector<8x1xf32>
      %cst_18 = arith.constant 0.699999988 : f32
      %60 = vector.broadcast %cst_18 : f32 to vector<8x896xf32>
      %61 = arith.cmpf ogt, %57, %60 : vector<8x896xf32>
      %62 = vector.broadcast %59 : vector<8x1xf32> to vector<8x896xf32>
      %63 = arith.cmpf oeq, %57, %62 : vector<8x896xf32>
      %cst_19 = arith.constant 0.000000e+00 : f32
      %64 = vector.broadcast %cst_19 : f32 to vector<8x1xf32>
      %65 = arith.cmpf ogt, %59, %64 : vector<8x1xf32>
      %66 = vector.broadcast %65 : vector<8x1xi1> to vector<8x896xi1>
      %67 = arith.andi %63, %66 : vector<8x896xi1>
      %68 = arith.ori %61, %67 : vector<8x896xi1>
      %c0_20 = arith.constant 0 : index
      %c0_21 = arith.constant 0 : index
      %c0_22 = arith.constant 0 : index
      %c0_23 = arith.constant 0 : index
      %69 = vector.load %arg7[%c0_20, %c0_21, %c0_22, %c0_23] : memref<1x3x8x896xf32, #tpu.memory_space<vmem>>, vector<1x1x8x896xf32>
      %70 = vector.shape_cast %69 : vector<1x1x8x896xf32> to vector<8x896xf32>
      %71 = vector.shape_cast %57 : vector<8x896xf32> to vector<1x1x8x896xf32>
      tpu.vector_store %arg7[%c0_20, %c0_21, %c0_22, %c0_23], %71 {strides = array<i32>} : memref<1x3x8x896xf32, #tpu.memory_space<vmem>>, vector<1x1x8x896xf32>,
      %cst_24 = arith.constant 1.000000e+00 : f32
      %cst_25 = arith.constant 0.000000e+00 : f32
      %72 = vector.broadcast %cst_24 : f32 to vector<8x896xf32>
      %73 = vector.broadcast %cst_25 : f32 to vector<8x896xf32>
      %74 = arith.select %68, %72, %73 : vector<8x896xi1>, vector<8x896xf32>
      %c0_26 = arith.constant 0 : index
      %c1 = arith.constant 1 : index
      %c0_27 = arith.constant 0 : index
      %c0_28 = arith.constant 0 : index
      %75 = vector.load %arg7[%c0_26, %c1, %c0_27, %c0_28] : memref<1x3x8x896xf32, #tpu.memory_space<vmem>>, vector<1x1x8x896xf32>
      %76 = vector.shape_cast %75 : vector<1x1x8x896xf32> to vector<8x896xf32>
      %77 = vector.shape_cast %74 : vector<8x896xf32> to vector<1x1x8x896xf32>
      tpu.vector_store %arg7[%c0_26, %c1, %c0_27, %c0_28], %77 {strides = array<i32>} : memref<1x3x8x896xf32, #tpu.memory_space<vmem>>, vector<1x1x8x896xf32>,
      %cst_29 = arith.constant 3.000000e-01 : f32
      %78 = vector.broadcast %cst_29 : f32 to vector<8x896xf32>
      %79 = arith.cmpf olt, %57, %78 : vector<8x896xf32>
      %cst_30 = arith.constant 1.000000e+00 : f32
      %cst_31 = arith.constant 0.000000e+00 : f32
      %80 = vector.broadcast %cst_30 : f32 to vector<8x896xf32>
      %81 = vector.broadcast %cst_31 : f32 to vector<8x896xf32>
      %82 = arith.select %79, %80, %81 : vector<8x896xi1>, vector<8x896xf32>
      %c0_32 = arith.constant 0 : index
      %c2 = arith.constant 2 : index
      %c0_33 = arith.constant 0 : index
      %c0_34 = arith.constant 0 : index
      %83 = vector.load %arg7[%c0_32, %c2, %c0_33, %c0_34] : memref<1x3x8x896xf32, #tpu.memory_space<vmem>>, vector<1x1x8x896xf32>
      %84 = vector.shape_cast %83 : vector<1x1x8x896xf32> to vector<8x896xf32>
      %85 = vector.shape_cast %82 : vector<8x896xf32> to vector<1x1x8x896xf32>
      tpu.vector_store %arg7[%c0_32, %c2, %c0_33, %c0_34], %85 {strides = array<i32>} : memref<1x3x8x896xf32, #tpu.memory_space<vmem>>, vector<1x1x8x896xf32>,
    } else {
    }
    return
  }
  func.func @transform_0(%arg0: i32) -> (i32, i32) {
    %c0_i32 = arith.constant 0 : i32
    %c0_i32_0 = arith.constant 0 : i32
    return %arg0, %c0_i32 : i32, i32
  }
  func.func @transform_1(%arg0: i32) -> (i32, i32) {
    %c0_i32 = arith.constant 0 : i32
    %c0_i32_0 = arith.constant 0 : i32
    %c0_i32_1 = arith.constant 0 : i32
    return %c0_i32, %c0_i32_0 : i32, i32
  }
  func.func @transform_2(%arg0: i32) -> (i32, i32) {
    %c0_i32 = arith.constant 0 : i32
    %c0_i32_0 = arith.constant 0 : i32
    %c0_i32_1 = arith.constant 0 : i32
    return %c0_i32, %c0_i32_0 : i32, i32
  }
  func.func @transform_3(%arg0: i32) -> (i32, i32) {
    %c0_i32 = arith.constant 0 : i32
    %c0_i32_0 = arith.constant 0 : i32
    %c0_i32_1 = arith.constant 0 : i32
    return %c0_i32, %c0_i32_0 : i32, i32
  }
  func.func @transform_4(%arg0: i32) -> (i32, i32) {
    %c0_i32 = arith.constant 0 : i32
    %c0_i32_0 = arith.constant 0 : i32
    %c0_i32_1 = arith.constant 0 : i32
    return %c0_i32, %c0_i32_0 : i32, i32
  }
  func.func @transform_5(%arg0: i32) -> (i32, i32) {
    %c0_i32 = arith.constant 0 : i32
    %c0_i32_0 = arith.constant 0 : i32
    return %arg0, %c0_i32 : i32, i32
  }
  func.func @transform_6(%arg0: i32) -> (i32, i32, i32, i32) {
    %c0_i32 = arith.constant 0 : i32
    %c0_i32_0 = arith.constant 0 : i32
    %c0_i32_1 = arith.constant 0 : i32
    %c0_i32_2 = arith.constant 0 : i32
    return %arg0, %c0_i32, %c0_i32_0, %c0_i32_1 : i32, i32, i32, i32
  }
}

</mosaic_0001>

<llo_original>
// kernel: squeeze.4
$region0: #{squeeze.4}
  %s0 = inlined_call_operand.vmem [shape: f32[1,3,8,784], index: 0, kind: input, shape index: {}]
  %s1 = inlined_call_operand.vmem [shape: f32[3,2,4,784], index: 1, kind: output, shape index: {}]
  $region1: #{squeeze.4} parent=0
    #allocation0 [shape = 'u8[172032]{0}', space=vmem, size = 0x2a000, scoped, tag = 'scoped mem for output reshape']
    %s2 = scalar_lea.vmem %s0, 48
    %v3 = vld [vmem:[%s2] sm:$0xff]
    %vm4 = vcmask 130048
    %s5 = scalar_lea.vmem [#allocation0], 48
    %6 = vst.msk [vmem:[%s5] sm:$0xf] %vm4, %v3
    %s7 = scalar_lea.vmem [#allocation0], 100
    %8 = vst.msk [vmem:[%s7] sm:$0xf0] %vm4, %v3
    %s9 = scalar_lea.vmem %s0, 104
    %v10 = vld [vmem:[%s9] sm:$0xff]
    %vm11 = vcmask 130048
    %s12 = scalar_lea.vmem [#allocation0], 160
    %13 = vst.msk [vmem:[%s12] sm:$0xf] %vm11, %v10
    %s14 = scalar_lea.vmem [#allocation0], 212
    %15 = vst.msk [vmem:[%s14] sm:$0xf0] %vm11, %v10
    %s16 = scalar_lea.vmem %s0, 160
    %v17 = vld [vmem:[%s16] sm:$0xff]
    %vm18 = vcmask 130048
    %s19 = scalar_lea.vmem [#allocation0], 272
    %20 = vst.msk [vmem:[%s19] sm:$0xf] %vm18, %v17
    %s21 = scalar_lea.vmem [#allocation0], 324
    %22 = vst.msk [vmem:[%s21] sm:$0xf0] %vm18, %v17
    %v23 = vld [vmem:[%s0] sm:$0xff]
    %24 = vst [vmem:[#allocation0] sm:$0xf] %v23
    %s25 = scalar_lea.vmem [#allocation0], 52
    %26 = vst [vmem:[%s25] sm:$0xf0] %v23
    %s27 = scalar_lea.vmem %s0, 8
    %v28 = vld [vmem:[%s27] sm:$0xff]
    %s29 = scalar_lea.vmem [#allocation0], 8
    %30 = vst [vmem:[%s29] sm:$0xf] %v28
    %s31 = scalar_lea.vmem [#allocation0], 60
    %32 = vst [vmem:[%s31] sm:$0xf0] %v28
    %s33 = scalar_lea.vmem %s0, 16
    %v34 = vld [vmem:[%s33] sm:$0xff]
    %s35 = scalar_lea.vmem [#allocation0], 16
    %36 = vst [vmem:[%s35] sm:$0xf] %v34
    %s37 = scalar_lea.vmem [#allocation0], 68
    %38 = vst [vmem:[%s37] sm:$0xf0] %v34
    %s39 = scalar_lea.vmem %s0, 24
    %v40 = vld [vmem:[%s39] sm:$0xff]
    %s41 = scalar_lea.vmem [#allocation0], 24
    %42 = vst [vmem:[%s41] sm:$0xf] %v40
    %s43 = scalar_lea.vmem [#allocation0], 76
    %44 = vst [vmem:[%s43] sm:$0xf0] %v40
    %s45 = scalar_lea.vmem %s0, 32
    %v46 = vld [vmem:[%s45] sm:$0xff]
    %s47 = scalar_lea.vmem [#allocation0], 32
    %48 = vst [vmem:[%s47] sm:$0xf] %v46
    %s49 = scalar_lea.vmem [#allocation0], 84
    %50 = vst [vmem:[%s49] sm:$0xf0] %v46
    %s51 = scalar_lea.vmem %s0, 40
    %v52 = vld [vmem:[%s51] sm:$0xff]
    %s53 = scalar_lea.vmem [#allocation0], 40
    %54 = vst [vmem:[%s53] sm:$0xf] %v52
    %s55 = scalar_lea.vmem [#allocation0], 92
    %56 = vst [vmem:[%s55] sm:$0xf0] %v52
    %s57 = scalar_lea.vmem %s0, 56
    %v58 = vld [vmem:[%s57] sm:$0xff]
    %s59 = scalar_lea.vmem [#allocation0], 112
    %60 = vst [vmem:[%s59] sm:$0xf] %v58
    %s61 = scalar_lea.vmem [#allocation0], 164
    %62 = vst [vmem:[%s61] sm:$0xf0] %v58
    %s63 = scalar_lea.vmem %s0, 64
    %v64 = vld [vmem:[%s63] sm:$0xff]
    %s65 = scalar_lea.vmem [#allocation0], 120
    %66 = vst [vmem:[%s65] sm:$0xf] %v64
    %s67 = scalar_lea.vmem [#allocation0], 172
    %68 = vst [vmem:[%s67] sm:$0xf0] %v64
    %s69 = scalar_lea.vmem %s0, 72
    %v70 = vld [vmem:[%s69] sm:$0xff]
    %s71 = scalar_lea.vmem [#allocation0], 128
    %72 = vst [vmem:[%s71] sm:$0xf] %v70
    %s73 = scalar_lea.vmem [#allocation0], 180
    %74 = vst [vmem:[%s73] sm:$0xf0] %v70
    %s75 = scalar_lea.vmem %s0, 80
    %v76 = vld [vmem:[%s75] sm:$0xff]
    %s77 = scalar_lea.vmem [#allocation0], 136
    %78 = vst [vmem:[%s77] sm:$0xf] %v76
    %s79 = scalar_lea.vmem [#allocation0], 188
    %80 = vst [vmem:[%s79] sm:$0xf0] %v76
    %s81 = scalar_lea.vmem %s0, 88
    %v82 = vld [vmem:[%s81] sm:$0xff]
    %s83 = scalar_lea.vmem [#allocation0], 144
    %84 = vst [vmem:[%s83] sm:$0xf] %v82
    %s85 = scalar_lea.vmem [#allocation0], 196
    %86 = vst [vmem:[%s85] sm:$0xf0] %v82
    %s87 = scalar_lea.vmem %s0, 96
    %v88 = vld [vmem:[%s87] sm:$0xff]
    %s89 = scalar_lea.vmem [#allocation0], 152
    %90 = vst [vmem:[%s89] sm:$0xf] %v88
    %s91 = scalar_lea.vmem [#allocation0], 204
    %92 = vst [vmem:[%s91] sm:$0xf0] %v88
    %s93 = scalar_lea.vmem %s0, 112
    %v94 = vld [vmem:[%s93] sm:$0xff]
    %s95 = scalar_lea.vmem [#allocation0], 224
    %96 = vst [vmem:[%s95] sm:$0xf] %v94
    %s97 = scalar_lea.vmem [#allocation0], 276
    %98 = vst [vmem:[%s97] sm:$0xf0] %v94
    %s99 = scalar_lea.vmem %s0, 120
    %v100 = vld [vmem:[%s99] sm:$0xff]
    %s101 = scalar_lea.vmem [#allocation0], 232
    %102 = vst [vmem:[%s101] sm:$0xf] %v100
    %s103 = scalar_lea.vmem [#allocation0], 284
    %104 = vst [vmem:[%s103] sm:$0xf0] %v100
    %s105 = scalar_lea.vmem %s0, 128
    %v106 = vld [vmem:[%s105] sm:$0xff]
    %s107 = scalar_lea.vmem [#allocation0], 240
    %108 = vst [vmem:[%s107] sm:$0xf] %v106
    %s109 = scalar_lea.vmem [#allocation0], 292
    %110 = vst [vmem:[%s109] sm:$0xf0] %v106
    %s111 = scalar_lea.vmem %s0, 136
    %v112 = vld [vmem:[%s111] sm:$0xff]
    %s113 = scalar_lea.vmem [#allocation0], 248
    %114 = vst [vmem:[%s113] sm:$0xf] %v112
    %s115 = scalar_lea.vmem [#allocation0], 300
    %116 = vst [vmem:[%s115] sm:$0xf0] %v112
    %s117 = scalar_lea.vmem %s0, 144
    %v118 = vld [vmem:[%s117] sm:$0xff]
    %s119 = scalar_lea.vmem [#allocation0], 256
    %120 = vst [vmem:[%s119] sm:$0xf] %v118
    %s121 = scalar_lea.vmem [#allocation0], 308
    %122 = vst [vmem:[%s121] sm:$0xf0] %v118
    %s123 = scalar_lea.vmem %s0, 152
    %v124 = vld [vmem:[%s123] sm:$0xff]
    %s125 = scalar_lea.vmem [#allocation0], 264
    %126 = vst [vmem:[%s125] sm:$0xf] %v124
    %s127 = scalar_lea.vmem [#allocation0], 316
    %128 = vst [vmem:[%s127] sm:$0xf0] %v124
    %s130 = sshllo.u32 0, 4
    %v132 = vld [vmem:[#allocation0] sm:%s130]
    %s133 = sshllo.u32 0, 4
    %134 = vst [vmem:[%s1] sm:%s133] %v132
    %s135 = scalar_lea.vmem [#allocation0], 8
    %v136 = vld [vmem:[%s135] sm:%s130]
    %s137 = sshllo.u32 0, 4
    %s138 = scalar_lea.vmem %s1, 4
    %139 = vst [vmem:[%s138] sm:%s137] %v136
    %s140 = scalar_lea.vmem [#allocation0], 16
    %v141 = vld [vmem:[%s140] sm:%s130]
    %s142 = sshllo.u32 0, 4
    %s143 = smul.addr 4, 2
    %s144 = scalar_lea.vmem %s1, %s143
    %145 = vst [vmem:[%s144] sm:%s142] %v141
    %s146 = scalar_lea.vmem [#allocation0], 24
    %v147 = vld [vmem:[%s146] sm:%s130]
    %s148 = sshllo.u32 0, 4
    %s149 = smul.addr 4, 3
    %s150 = scalar_lea.vmem %s1, %s149
    %151 = vst [vmem:[%s150] sm:%s148] %v147
    %s152 = scalar_lea.vmem [#allocation0], 32
    %v153 = vld [vmem:[%s152] sm:%s130]
    %s154 = sshllo.u32 0, 4
    %s155 = smul.addr 4, 4
    %s156 = scalar_lea.vmem %s1, %s155
    %157 = vst [vmem:[%s156] sm:%s154] %v153
    %s158 = scalar_lea.vmem [#allocation0], 40
    %v159 = vld [vmem:[%s158] sm:%s130]
    %s160 = sshllo.u32 0, 4
    %s161 = smul.addr 4, 5
    %s162 = scalar_lea.vmem %s1, %s161
    %163 = vst [vmem:[%s162] sm:%s160] %v159
    %s164 = scalar_lea.vmem [#allocation0], 48
    %v165 = vld [vmem:[%s164] sm:%s130]
    %s166 = sshllo.u32 0, 4
    %s167 = smul.addr 4, 6
    %s168 = scalar_lea.vmem %s1, %s167
    %169 = vst [vmem:[%s168] sm:%s166] %v165
    %s170 = scalar_lea.vmem [#allocation0], 56
    %v171 = vld [vmem:[%s170] sm:%s130]
    %s172 = sshllo.u32 0, 4
    %s173 = smul.addr 4, 7
    %s174 = scalar_lea.vmem %s1, %s173
    %175 = vst [vmem:[%s174] sm:%s172] %v171
    %s176 = scalar_lea.vmem [#allocation0], 64
    %v177 = vld [vmem:[%s176] sm:%s130]
    %s178 = sshllo.u32 0, 4
    %s179 = smul.addr 4, 8
    %s180 = scalar_lea.vmem %s1, %s179
    %181 = vst [vmem:[%s180] sm:%s178] %v177
    %s182 = scalar_lea.vmem [#allocation0], 72
    %v183 = vld [vmem:[%s182] sm:%s130]
    %s184 = sshllo.u32 0, 4
    %s185 = smul.addr 4, 9
    %s186 = scalar_lea.vmem %s1, %s185
    %187 = vst [vmem:[%s186] sm:%s184] %v183
    %s188 = scalar_lea.vmem [#allocation0], 80
    %v189 = vld [vmem:[%s188] sm:%s130]
    %s190 = sshllo.u32 0, 4
    %s191 = smul.addr 4, 10
    %s192 = scalar_lea.vmem %s1, %s191
    %193 = vst [vmem:[%s192] sm:%s190] %v189
    %s194 = scalar_lea.vmem [#allocation0], 88
    %v195 = vld [vmem:[%s194] sm:%s130]
    %s196 = sshllo.u32 0, 4
    %s197 = smul.addr 4, 11
    %s198 = scalar_lea.vmem %s1, %s197
    %199 = vst [vmem:[%s198] sm:%s196] %v195
    %s200 = scalar_lea.vmem [#allocation0], 96
    %v201 = vld [vmem:[%s200] sm:%s130]
    %s202 = sshllo.u32 0, 4
    %s203 = smul.addr 4, 12
    %s204 = scalar_lea.vmem %s1, %s203
    %205 = vst [vmem:[%s204] sm:%s202] %v201
    %s206 = scalar_lea.vmem [#allocation0], 104
    %v207 = vld [vmem:[%s206] sm:%s130]
    %s208 = sshllo.u32 0, 4
    %s209 = smul.addr 4, 13
    %s210 = scalar_lea.vmem %s1, %s209
    %211 = vst [vmem:[%s210] sm:%s208] %v207
    %s212 = scalar_lea.vmem [#allocation0], 112
    %v213 = vld [vmem:[%s212] sm:%s130]
    %s214 = sshllo.u32 0, 4
    %s215 = smul.addr 4, 14
    %s216 = scalar_lea.vmem %s1, %s215
    %217 = vst [vmem:[%s216] sm:%s214] %v213
    %s218 = scalar_lea.vmem [#allocation0], 120
    %v219 = vld [vmem:[%s218] sm:%s130]
    %s220 = sshllo.u32 0, 4
    %s221 = smul.addr 4, 15
    %s222 = scalar_lea.vmem %s1, %s221
    %223 = vst [vmem:[%s222] sm:%s220] %v219
    %s224 = scalar_lea.vmem [#allocation0], 128
    %v225 = vld [vmem:[%s224] sm:%s130]
    %s226 = sshllo.u32 0, 4
    %s227 = smul.addr 4, 16
    %s228 = scalar_lea.vmem %s1, %s227
    %229 = vst [vmem:[%s228] sm:%s226] %v225
    %s230 = scalar_lea.vmem [#allocation0], 136
    %v231 = vld [vmem:[%s230] sm:%s130]
    %s232 = sshllo.u32 0, 4
    %s233 = smul.addr 4, 17
    %s234 = scalar_lea.vmem %s1, %s233
    %235 = vst [vmem:[%s234] sm:%s232] %v231
    %s236 = scalar_lea.vmem [#allocation0], 144
    %v237 = vld [vmem:[%s236] sm:%s130]
    %s238 = sshllo.u32 0, 4
    %s239 = smul.addr 4, 18
    %s240 = scalar_lea.vmem %s1, %s239
    %241 = vst [vmem:[%s240] sm:%s238] %v237
    %s242 = scalar_lea.vmem [#allocation0], 152
    %v243 = vld [vmem:[%s242] sm:%s130]
    %s244 = sshllo.u32 0, 4
    %s245 = smul.addr 4, 19
    %s246 = scalar_lea.vmem %s1, %s245
    %247 = vst [vmem:[%s246] sm:%s244] %v243
    %s248 = scalar_lea.vmem [#allocation0], 160
    %v249 = vld [vmem:[%s248] sm:%s130]
    %s250 = sshllo.u32 0, 4
    %s251 = smul.addr 4, 20
    %s252 = scalar_lea.vmem %s1, %s251
    %253 = vst [vmem:[%s252] sm:%s250] %v249
    %s254 = scalar_lea.vmem [#allocation0], 168
    %v255 = vld [vmem:[%s254] sm:%s130]
    %s256 = sshllo.u32 0, 4
    %s257 = smul.addr 4, 21
    %s258 = scalar_lea.vmem %s1, %s257
    %259 = vst [vmem:[%s258] sm:%s256] %v255
    %s260 = scalar_lea.vmem [#allocation0], 176
    %v261 = vld [vmem:[%s260] sm:%s130]
    %s262 = sshllo.u32 0, 4
    %s263 = smul.addr 4, 22
    %s264 = scalar_lea.vmem %s1, %s263
    %265 = vst [vmem:[%s264] sm:%s262] %v261
    %s266 = scalar_lea.vmem [#allocation0], 184
    %v267 = vld [vmem:[%s266] sm:%s130]
    %s268 = sshllo.u32 0, 4
    %s269 = smul.addr 4, 23
    %s270 = scalar_lea.vmem %s1, %s269
    %271 = vst [vmem:[%s270] sm:%s268] %v267
    %s272 = scalar_lea.vmem [#allocation0], 192
    %v273 = vld [vmem:[%s272] sm:%s130]
    %s274 = sshllo.u32 0, 4
    %s275 = smul.addr 4, 24
    %s276 = scalar_lea.vmem %s1, %s275
    %277 = vst [vmem:[%s276] sm:%s274] %v273
    %s278 = scalar_lea.vmem [#allocation0], 200
    %v279 = vld [vmem:[%s278] sm:%s130]
    %s280 = sshllo.u32 0, 4
    %s281 = smul.addr 4, 25
    %s282 = scalar_lea.vmem %s1, %s281
    %283 = vst [vmem:[%s282] sm:%s280] %v279
    %s284 = scalar_lea.vmem [#allocation0], 208
    %v285 = vld [vmem:[%s284] sm:%s130]
    %s286 = sshllo.u32 0, 4
    %s287 = smul.addr 4, 26
    %s288 = scalar_lea.vmem %s1, %s287
    %289 = vst [vmem:[%s288] sm:%s286] %v285
    %s290 = scalar_lea.vmem [#allocation0], 216
    %v291 = vld [vmem:[%s290] sm:%s130]
    %s292 = sshllo.u32 0, 4
    %s293 = smul.addr 4, 27
    %s294 = scalar_lea.vmem %s1, %s293
    %295 = vst [vmem:[%s294] sm:%s292] %v291
    %s296 = scalar_lea.vmem [#allocation0], 224
    %v297 = vld [vmem:[%s296] sm:%s130]
    %s298 = sshllo.u32 0, 4
    %s299 = smul.addr 4, 28
    %s300 = scalar_lea.vmem %s1, %s299
    %301 = vst [vmem:[%s300] sm:%s298] %v297
    %s302 = scalar_lea.vmem [#allocation0], 232
    %v303 = vld [vmem:[%s302] sm:%s130]
    %s304 = sshllo.u32 0, 4
    %s305 = smul.addr 4, 29
    %s306 = scalar_lea.vmem %s1, %s305
    %307 = vst [vmem:[%s306] sm:%s304] %v303
    %s308 = scalar_lea.vmem [#allocation0], 240
    %v309 = vld [vmem:[%s308] sm:%s130]
    %s310 = sshllo.u32 0, 4
    %s311 = smul.addr 4, 30
    %s312 = scalar_lea.vmem %s1, %s311
    %313 = vst [vmem:[%s312] sm:%s310] %v309
    %s314 = scalar_lea.vmem [#allocation0], 248
    %v315 = vld [vmem:[%s314] sm:%s130]
    %s316 = sshllo.u32 0, 4
    %s317 = smul.addr 4, 31
    %s318 = scalar_lea.vmem %s1, %s317
    %319 = vst [vmem:[%s318] sm:%s316] %v315
    %s320 = scalar_lea.vmem [#allocation0], 256
    %v321 = vld [vmem:[%s320] sm:%s130]
    %s322 = sshllo.u32 0, 4
    %s323 = smul.addr 4, 32
    %s324 = scalar_lea.vmem %s1, %s323
    %325 = vst [vmem:[%s324] sm:%s322] %v321
    %s326 = scalar_lea.vmem [#allocation0], 264
    %v327 = vld [vmem:[%s326] sm:%s130]
    %s328 = sshllo.u32 0, 4
    %s329 = smul.addr 4, 33
    %s330 = scalar_lea.vmem %s1, %s329
    %331 = vst [vmem:[%s330] sm:%s328] %v327
    %s332 = scalar_lea.vmem [#allocation0], 272
    %v333 = vld [vmem:[%s332] sm:%s130]
    %s334 = sshllo.u32 0, 4
    %s335 = smul.addr 4, 34
    %s336 = scalar_lea.vmem %s1, %s335
    %337 = vst [vmem:[%s336] sm:%s334] %v333
    %s338 = scalar_lea.vmem [#allocation0], 280
    %v339 = vld [vmem:[%s338] sm:%s130]
    %s340 = sshllo.u32 0, 4
    %s341 = smul.addr 4, 35
    %s342 = scalar_lea.vmem %s1, %s341
    %343 = vst [vmem:[%s342] sm:%s340] %v339
    %s344 = scalar_lea.vmem [#allocation0], 288
    %v345 = vld [vmem:[%s344] sm:%s130]
    %s346 = sshllo.u32 0, 4
    %s347 = smul.addr 4, 36
    %s348 = scalar_lea.vmem %s1, %s347
    %349 = vst [vmem:[%s348] sm:%s346] %v345
    %s350 = scalar_lea.vmem [#allocation0], 296
    %v351 = vld [vmem:[%s350] sm:%s130]
    %s352 = sshllo.u32 0, 4
    %s353 = smul.addr 4, 37
    %s354 = scalar_lea.vmem %s1, %s353
    %355 = vst [vmem:[%s354] sm:%s352] %v351
    %s356 = scalar_lea.vmem [#allocation0], 304
    %v357 = vld [vmem:[%s356] sm:%s130]
    %s358 = sshllo.u32 0, 4
    %s359 = smul.addr 4, 38
    %s360 = scalar_lea.vmem %s1, %s359
    %361 = vst [vmem:[%s360] sm:%s358] %v357
    %s362 = scalar_lea.vmem [#allocation0], 312
    %v363 = vld [vmem:[%s362] sm:%s130]
    %s364 = sshllo.u32 0, 4
    %s365 = smul.addr 4, 39
    %s366 = scalar_lea.vmem %s1, %s365
    %367 = vst [vmem:[%s366] sm:%s364] %v363
    %s368 = scalar_lea.vmem [#allocation0], 320
    %v369 = vld [vmem:[%s368] sm:%s130]
    %s370 = sshllo.u32 0, 4
    %s371 = smul.addr 4, 40
    %s372 = scalar_lea.vmem %s1, %s371
    %373 = vst [vmem:[%s372] sm:%s370] %v369
    %s374 = scalar_lea.vmem [#allocation0], 328
    %v375 = vld [vmem:[%s374] sm:%s130]
    %s376 = sshllo.u32 0, 4
    %s377 = smul.addr 4, 41
    %s378 = scalar_lea.vmem %s1, %s377
    %379 = vst [vmem:[%s378] sm:%s376] %v375

// kernel: a_call__.1
$region0: #{a_call__.1}
  #allocation0 [shape = 'u32[]', space=smem, size = 0x4, offset = 0x4, fixed_abs, tag = 'smem constant byte address 0x4 - core index']
  #allocation1 [shape = 'u32[144,128]{1,0:T(1,128)}', space=vmem, size = 0x12000, scoped, tag = 'internal scratch']
  %s0 = inlined_call_operand.vmem [shape: bf16[416,288], index: 0, kind: input, shape index: {}]
  %s1 = inlined_call_operand.vmem [shape: bf16[288,128], index: 1, kind: input, shape index: {}]
  %s2 = inlined_call_operand.vmem [shape: f32[1,128], index: 2, kind: input, shape index: {}]
  %s3 = inlined_call_operand.vmem [shape: f32[4,896], index: 3, kind: input, shape index: {}]
  %s4 = inlined_call_operand.vmem [shape: f32[8,4], index: 4, kind: input, shape index: {}]
  %s5 = inlined_call_operand.vmem [shape: bf16[416,128], index: 5, kind: output, shape index: {0}]
  %s6 = inlined_call_operand.vmem [shape: f32[2,3,8,896], index: 6, kind: output, shape index: {1}]
  %7 = xla_tuple %s5, %s6
  %s8 = sld [smem:[#allocation0]]
  $region65: #{a_call__.1} parent=0
    _
  %s10 = ssub.s32 1, %s8
  %s11 = scalar_select 0, %s10, %s8
  loop: start=0, step=1, limit=4
  $region2: #{a_call__.1} parent=0 // loop_pre_header
    _
  $region3: #{a_call__.1} parent=0 // loop_header
    %s13 = sphi 0, %s17
    %p14 = scmp.ge.s32.totalorder %s13, 4
    %s23 = sphi 0, %s25
    %s26 = sphi 0, %s23
    %s27 = sphi 0, %s26
    %s43 = sphi 0, %s27
    %s47 = sphi 0, %s47
    %s49 = sphi 0, %s47
    %s50 = sphi 0, %s49
    %s64 = sphi 0, %s50
    %s68 = sphi 0, %s68
    %s70 = sphi 0, %s68
    %s71 = sphi 0, %s70
    %s85 = sphi 0, %s71
    %s89 = sphi 0, %s89
    %s91 = sphi 0, %s89
    %s92 = sphi 0, %s91
    %s106 = sphi 0, %s92
    %s110 = sphi 0, %s110
    %s112 = sphi 0, %s110
    %s113 = sphi 0, %s112
    %s127 = sphi 0, %s113
    %s133 = sphi 0, %s135
    %s136 = sphi 0, %s133
    %s137 = sphi 0, %s136
    %s153 = sphi 0, %s137
    %s159 = sphi 0, %s161
    %s162 = sphi 0, %s159
    %s163 = sphi 0, %s162
    %s179 = sphi 0, %s163
  $region4: #{a_call__.1} parent=0 // loop_header_branch
    %16 = sbr.rel (%p14) target = $region8
  $region5: #{a_call__.1} parent=0 // loop_body
    %s18 = ssub.s32 %s13, 1
    %s19 = ssub.s32 %s13, 2
    %s20 = sadd.s32 %s13, 1
    %s21 = ssub.s32 %s13, %s20
    %p22 = scmp.eq.s32.totalorder %s21, 0
    %s24 = sadd.s32 %s23, 1
    %s25 = scalar_select %p22, %s23, %s24
    %p28 = pneg %p22
    %p29 = scmp.eq.s32.totalorder %s13, 1
    %p30 = por %p28, %p29
    %p31 = scmp.ne.s32.totalorder %s23, %s26
    %p32 = scmp.eq.s32.totalorder %s13, 0
    %p33 = por %p31, %p32
    %p34 = scmp.ne.s32.totalorder %s23, %s26
    %p35 = scmp.eq.s32.totalorder %s18, 1
    %p36 = por %p34, %p35
    %p37 = scmp.ne.s32.totalorder %s26, %s27
    %p38 = scmp.eq.s32.totalorder %s18, 0
    %p39 = por %p37, %p38
    %p40 = scmp.ne.s32.totalorder %s26, %s27
    %p41 = scmp.eq.s32.totalorder %s19, 1
    %p42 = por %p40, %p41
    %p44 = scmp.ne.s32.totalorder %s27, %s43
    %p45 = scmp.eq.s32.totalorder %s19, 0
    %p46 = por %p44, %p45
    %s48 = sadd.s32 %s47, 1
    %p51 = scmp.eq.s32.totalorder %s13, 1
    %p52 = scmp.ne.s32.totalorder %s47, %s49
    %p53 = scmp.eq.s32.totalorder %s13, 0
    %p54 = por %p52, %p53
    %p55 = scmp.ne.s32.totalorder %s47, %s49
    %p56 = scmp.eq.s32.totalorder %s18, 1
    %p57 = por %p55, %p56
    %p58 = scmp.ne.s32.totalorder %s49, %s50
    %p59 = scmp.eq.s32.totalorder %s18, 0
    %p60 = por %p58, %p59
    %p61 = scmp.ne.s32.totalorder %s49, %s50
    %p62 = scmp.eq.s32.totalorder %s19, 1
    %p63 = por %p61, %p62
    %p65 = scmp.ne.s32.totalorder %s50, %s64
    %p66 = scmp.eq.s32.totalorder %s19, 0
    %p67 = por %p65, %p66
    %s69 = sadd.s32 %s68, 1
    %p72 = scmp.eq.s32.totalorder %s13, 1
    %p73 = scmp.ne.s32.totalorder %s68, %s70
    %p74 = scmp.eq.s32.totalorder %s13, 0
    %p75 = por %p73, %p74
    %p76 = scmp.ne.s32.totalorder %s68, %s70
    %p77 = scmp.eq.s32.totalorder %s18, 1
    %p78 = por %p76, %p77
    %p79 = scmp.ne.s32.totalorder %s70, %s71
    %p80 = scmp.eq.s32.totalorder %s18, 0
    %p81 = por %p79, %p80
    %p82 = scmp.ne.s32.totalorder %s70, %s71
    %p83 = scmp.eq.s32.totalorder %s19, 1
    %p84 = por %p82, %p83
    %p86 = scmp.ne.s32.totalorder %s71, %s85
    %p87 = scmp.eq.s32.totalorder %s19, 0
    %p88 = por %p86, %p87
    %s90 = sadd.s32 %s89, 1
    %p93 = scmp.eq.s32.totalorder %s13, 1
    %p94 = scmp.ne.s32.totalorder %s89, %s91
    %p95 = scmp.eq.s32.totalorder %s13, 0
    %p96 = por %p94, %p95
    %p97 = scmp.ne.s32.totalorder %s89, %s91
    %p98 = scmp.eq.s32.totalorder %s18, 1
    %p99 = por %p97, %p98
    %p100 = scmp.ne.s32.totalorder %s91, %s92
    %p101 = scmp.eq.s32.totalorder %s18, 0
    %p102 = por %p100, %p101
    %p103 = scmp.ne.s32.totalorder %s91, %s92
    %p104 = scmp.eq.s32.totalorder %s19, 1
    %p105 = por %p103, %p104
    %p107 = scmp.ne.s32.totalorder %s92, %s106
    %p108 = scmp.eq.s32.totalorder %s19, 0
    %p109 = por %p107, %p108
    %s111 = sadd.s32 %s110, 1
    %p114 = scmp.eq.s32.totalorder %s13, 1
    %p115 = scmp.ne.s32.totalorder %s110, %s112
    %p116 = scmp.eq.s32.totalorder %s13, 0
    %p117 = por %p115, %p116
    %p118 = scmp.ne.s32.totalorder %s110, %s112
    %p119 = scmp.eq.s32.totalorder %s18, 1
    %p120 = por %p118, %p119
    %p121 = scmp.ne.s32.totalorder %s112, %s113
    %p122 = scmp.eq.s32.totalorder %s18, 0
    %p123 = por %p121, %p122
    %p124 = scmp.ne.s32.totalorder %s112, %s113
    %p125 = scmp.eq.s32.totalorder %s19, 1
    %p126 = por %p124, %p125
    %p128 = scmp.ne.s32.totalorder %s113, %s127
    %p129 = scmp.eq.s32.totalorder %s19, 0
    %p130 = por %p128, %p129
    %s131 = ssub.s32 %s13, %s20
    %p132 = scmp.eq.s32.totalorder %s131, 0
    %s134 = sadd.s32 %s133, 1
    %s135 = scalar_select %p132, %s133, %s134
    %p138 = pneg %p132
    %p139 = scmp.eq.s32.totalorder %s13, 1
    %p140 = por %p138, %p139
    %p141 = scmp.ne.s32.totalorder %s133, %s136
    %p142 = scmp.eq.s32.totalorder %s13, 0
    %p143 = por %p141, %p142
    %p144 = scmp.ne.s32.totalorder %s133, %s136
    %p145 = scmp.eq.s32.totalorder %s18, 1
    %p146 = por %p144, %p145
    %p147 = scmp.ne.s32.totalorder %s136, %s137
    %p148 = scmp.eq.s32.totalorder %s18, 0
    %p149 = por %p147, %p148
    %p150 = scmp.ne.s32.totalorder %s136, %s137
    %p151 = scmp.eq.s32.totalorder %s19, 1
    %p152 = por %p150, %p151
    %p154 = scmp.ne.s32.totalorder %s137, %s153
    %p155 = scmp.eq.s32.totalorder %s19, 0
    %p156 = por %p154, %p155
    %s157 = ssub.s32 %s13, %s20
    %p158 = scmp.eq.s32.totalorder %s157, 0
    %s160 = sadd.s32 %s159, 1
    %s161 = scalar_select %p158, %s159, %s160
    %p164 = pneg %p158
    %p165 = scmp.eq.s32.totalorder %s13, 1
    %p166 = por %p164, %p165
    %p167 = scmp.ne.s32.totalorder %s159, %s162
    %p168 = scmp.eq.s32.totalorder %s13, 0
    %p169 = por %p167, %p168
    %p170 = scmp.ne.s32.totalorder %s159, %s162
    %p171 = scmp.eq.s32.totalorder %s18, 1
    %p172 = por %p170, %p171
    %p173 = scmp.ne.s32.totalorder %s162, %s163
    %p174 = scmp.eq.s32.totalorder %s18, 0
    %p175 = por %p173, %p174
    %p176 = scmp.ne.s32.totalorder %s162, %s163
    %p177 = scmp.eq.s32.totalorder %s19, 1
    %p178 = por %p176, %p177
    %p180 = scmp.ne.s32.totalorder %s163, %s179
    %p181 = scmp.eq.s32.totalorder %s19, 0
    %p182 = por %p180, %p181
    %p183 = scmp.le.s32.totalorder 1, %s13
    %p184 = scmp.lt.s32.totalorder %s13, 3
    %p185 = pnand %p183, %p184
    %p186 = pneg %p185
    // Predicated region
    $region9: #{a_call__.1} parent=5 // pred_check
      _
    $region10: #{a_call__.1} parent=5 // pred_check_branch
      %188 = sbr.rel (%p185) target = $region12
    $region11: #{a_call__.1} parent=5 // pred_region
      %s189 = ssub.s32 %s13, 1
      // Predicated region
      $region13: #{a_call__.1} parent=11 // pred_check
        %p190 = pneg %p60
      $region14: #{a_call__.1} parent=11 // pred_check_branch
        %192 = sbr.rel (%p190) target = $region16
      $region15: #{a_call__.1} parent=11 // pred_region
        _
      $region16: #{a_call__.1} parent=11 // pred_fallthru
        _
      // Predicated region
      $region17: #{a_call__.1} parent=11 // pred_check
        %p193 = pneg %p81
      $region18: #{a_call__.1} parent=11 // pred_check_branch
        %195 = sbr.rel (%p193) target = $region20
      $region19: #{a_call__.1} parent=11 // pred_region
        _
      $region20: #{a_call__.1} parent=11 // pred_fallthru
        _
      // Predicated region
      $region21: #{a_call__.1} parent=11 // pred_check
        %p196 = pneg %p102
      $region22: #{a_call__.1} parent=11 // pred_check_branch
        %198 = sbr.rel (%p196) target = $region24
      $region23: #{a_call__.1} parent=11 // pred_region
        _
      $region24: #{a_call__.1} parent=11 // pred_fallthru
        _
      // Predicated region
      $region25: #{a_call__.1} parent=11 // pred_check
        %p199 = pneg %p123
      $region26: #{a_call__.1} parent=11 // pred_check_branch
        %201 = sbr.rel (%p199) target = $region28
      $region27: #{a_call__.1} parent=11 // pred_region
        _
      $region28: #{a_call__.1} parent=11 // pred_fallthru
        _
    $region12: #{a_call__.1} parent=5 // pred_fallthru
      _
    %p202 = scmp.lt.s32.totalorder %s13, 2
    // Predicated region
    $region29: #{a_call__.1} parent=5 // pred_check
      %p203 = pneg %p202
    $region30: #{a_call__.1} parent=5 // pred_check_branch
      %205 = sbr.rel (%p203) target = $region32
    $region31: #{a_call__.1} parent=5 // pred_region
      // Predicated region
      $region33: #{a_call__.1} parent=31 // pred_check
        %p206 = pneg %p33
      $region34: #{a_call__.1} parent=31 // pred_check_branch
        %208 = sbr.rel (%p206) target = $region36
      $region35: #{a_call__.1} parent=31 // pred_region
        %s209 = smul.u32 26, %s13
        %p210 = scmp.lt.s32.totalorder %s209, 51
        %s211 = scalar_select %p210, %s209, 51
        %s212 = smul.addr %s211, 3
        %s213 = smul.addr %s212, 4
        %s214 = scalar_lea.vmem %s0, %s213
        %s215 = smul.u32 26, %s13
      $region36: #{a_call__.1} parent=31 // pred_fallthru
        _
    $region32: #{a_call__.1} parent=5 // pred_fallthru
      _
    %p216 = scmp.le.s32.totalorder 1, %s13
    %p217 = scmp.lt.s32.totalorder %s13, 3
    %p218 = pnand %p216, %p217
    %p219 = pneg %p218
    // Predicated region
    $region37: #{a_call__.1} parent=5 // pred_check
      _
    $region38: #{a_call__.1} parent=5 // pred_check_branch
      %221 = sbr.rel (%p218) target = $region40
    $region39: #{a_call__.1} parent=5 // pred_region
      %s222 = ssub.s32 %s13, 1
      %s223 = smul.u32 26, %s18
      %p224 = scmp.lt.s32.totalorder %s223, 51
      %s225 = scalar_select %p224, %s223, 51
      %s226 = smul.addr %s225, 3
      %s227 = smul.addr %s226, 4
      %s228 = scalar_lea.vmem %s0, %s227
      %p229 = pneg %p39
      %p230 = pneg %p36
      %p231 = pneg %p60
      %p232 = pneg %p57
      %p233 = pneg %p81
      %p234 = pneg %p78
      %p235 = pneg %p102
      %p236 = pneg %p99
      %p237 = pneg %p123
      %p238 = pneg %p120
      %p239 = pneg %p149
      %p240 = pneg %p146
      %s241 = smul.u32 26, %s18
      %p242 = scmp.lt.s32.totalorder %s241, 51
      %s243 = scalar_select %p242, %s241, 51
      %s244 = smul.addr %s243, 4
      %s245 = scalar_lea.vmem %s5, %s244
      %p246 = pneg %p175
      %p247 = pneg %p172
      %p248 = scmp.lt.s32.totalorder %s18, 1
      %s249 = scalar_select %p248, %s18, 1
      %s250 = smul.addr %s249, 21
      %s251 = smul.addr %s250, 8
      %s252 = scalar_lea.vmem %s6, %s251
      %s253 = smul.u32 26, %s18
      %p254 = scmp.lt.s32.totalorder %s253, 51
      %s255 = scalar_select %p254, %s253, 51
      %s256 = smul.addr %s255, 3
      %s257 = smul.addr %s256, 4
      %s258 = scalar_lea.vmem %s0, %s257
      %s259 = smul.u32 26, %s18
      %s260 = smul.u32 26, %s18
      %p261 = scmp.lt.s32.totalorder %s260, 51
      %s262 = scalar_select %p261, %s260, 51
      %s263 = smul.addr %s262, 4
      %s264 = scalar_lea.vmem %s5, %s263
      %s265 = smul.u32 26, %s18
      %p266 = scmp.lt.s32.totalorder %s18, 1
      %s267 = scalar_select %p266, %s18, 1
      %s268 = smul.addr %s267, 21
      %s269 = smul.addr %s268, 8
      %s270 = scalar_lea.vmem %s6, %s269
      %v272 = vld [vmem:[%s258] sm:$0xff]
      %v273 = vld [vmem:[%s258 + $0x8] sm:$0xf]
      %v274 = vld [vmem:[%s258 + $0xc] sm:$0xff]
      %v275 = vld [vmem:[%s258 + $0x14] sm:$0xf]
      %v276 = vld [vmem:[%s258 + $0x18] sm:$0xff]
      %v277 = vld [vmem:[%s258 + $0x20] sm:$0xf]
      %v278 = vld [vmem:[%s258 + $0x24] sm:$0xff]
      %v279 = vld [vmem:[%s258 + $0x2c] sm:$0xf]
      %v280 = vld [vmem:[%s258 + $0x30] sm:$0xff]
      %v281 = vld [vmem:[%s258 + $0x38] sm:$0xf]
      %v282 = vld [vmem:[%s258 + $0x3c] sm:$0xff]
      %v283 = vld [vmem:[%s258 + $0x44] sm:$0xf]
      %v284 = vld [vmem:[%s258 + $0x48] sm:$0xff]
      %v285 = vld [vmem:[%s258 + $0x50] sm:$0xf]
      %v286 = vld [vmem:[%s258 + $0x54] sm:$0xff]
      %v287 = vld [vmem:[%s258 + $0x5c] sm:$0xf]
      %v288 = vld [vmem:[%s258 + $0x60] sm:$0xff]
      %v289 = vld [vmem:[%s258 + $0x68] sm:$0xf]
      %v290 = vld [vmem:[%s258 + $0x6c] sm:$0xff]
      %v291 = vld [vmem:[%s258 + $0x74] sm:$0xf]
      %v292 = vld [vmem:[%s258 + $0x78] sm:$0xff]
      %v293 = vld [vmem:[%s258 + $0x80] sm:$0xf]
      %v294 = vld [vmem:[%s258 + $0x84] sm:$0xff]
      %v295 = vld [vmem:[%s258 + $0x8c] sm:$0xf]
      %v296 = vld [vmem:[%s258 + $0x90] sm:$0xff]
      %v297 = vld [vmem:[%s258 + $0x98] sm:$0xf]
      %v298 = vld [vmem:[%s258 + $0x9c] sm:$0xff]
      %v299 = vld [vmem:[%s258 + $0xa4] sm:$0xf]
      %v300 = vld [vmem:[%s258 + $0xa8] sm:$0xff]
      %v301 = vld [vmem:[%s258 + $0xb0] sm:$0xf]
      %v302 = vld [vmem:[%s258 + $0xb4] sm:$0xff]
      %v303 = vld [vmem:[%s258 + $0xbc] sm:$0xf]
      %v304 = vld [vmem:[%s258 + $0xc0] sm:$0xff]
      %v305 = vld [vmem:[%s258 + $0xc8] sm:$0xf]
      %v306 = vld [vmem:[%s258 + $0xcc] sm:$0xff]
      %v307 = vld [vmem:[%s258 + $0xd4] sm:$0xf]
      %v308 = vld [vmem:[%s258 + $0xd8] sm:$0xff]
      %v309 = vld [vmem:[%s258 + $0xe0] sm:$0xf]
      %v310 = vld [vmem:[%s258 + $0xe4] sm:$0xff]
      %v311 = vld [vmem:[%s258 + $0xec] sm:$0xf]
      %v312 = vld [vmem:[%s258 + $0xf0] sm:$0xff]
      %v313 = vld [vmem:[%s258 + $0xf8] sm:$0xf]
      %v314 = vld [vmem:[%s258 + $0xfc] sm:$0xff]
      %v315 = vld [vmem:[%s258 + $0x104] sm:$0xf]
      %v316 = vld [vmem:[%s258 + $0x108] sm:$0xff]
      %v317 = vld [vmem:[%s258 + $0x110] sm:$0xf]
      %v318 = vld [vmem:[%s258 + $0x114] sm:$0xff]
      %v319 = vld [vmem:[%s258 + $0x11c] sm:$0xf]
      %v320 = vld [vmem:[%s258 + $0x120] sm:$0xff]
      %v321 = vld [vmem:[%s258 + $0x128] sm:$0xf]
      %v322 = vld [vmem:[%s258 + $0x12c] sm:$0xff]
      %v323 = vld [vmem:[%s258 + $0x134] sm:$0xf]
      %v324 = vld [vmem:[%s1] sm:$0xf]
      %v325 = vld [vmem:[%s1 + $0x4] sm:$0xf]
      %v326 = vld [vmem:[%s1 + $0x8] sm:$0xf]
      %v327 = vld [vmem:[%s1 + $0xc] sm:$0xf]
      %v328 = vld [vmem:[%s1 + $0x10] sm:$0xf]
      %v329 = vld [vmem:[%s1 + $0x14] sm:$0xf]
      %v330 = vld [vmem:[%s1 + $0x18] sm:$0xf]
      %v331 = vld [vmem:[%s1 + $0x1c] sm:$0xf]
      %v332 = vld [vmem:[%s1 + $0x20] sm:$0xf]
      %v333 = vld [vmem:[%s1 + $0x24] sm:$0xf]
      %v334 = vld [vmem:[%s1 + $0x28] sm:$0xf]
      %v335 = vld [vmem:[%s1 + $0x2c] sm:$0xf]
      %v336 = vld [vmem:[%s1 + $0x30] sm:$0xf]
      %v337 = vld [vmem:[%s1 + $0x34] sm:$0xf]
      %v338 = vld [vmem:[%s1 + $0x38] sm:$0xf]
      %v339 = vld [vmem:[%s1 + $0x3c] sm:$0xf]
      %v340 = vld [vmem:[%s1 + $0x40] sm:$0xf]
      %v341 = vld [vmem:[%s1 + $0x44] sm:$0xf]
      %v342 = vld [vmem:[%s1 + $0x48] sm:$0xf]
      %v343 = vld [vmem:[%s1 + $0x4c] sm:$0xf]
      %v344 = vld [vmem:[%s1 + $0x50] sm:$0xf]
      %v345 = vld [vmem:[%s1 + $0x54] sm:$0xf]
      %v346 = vld [vmem:[%s1 + $0x58] sm:$0xf]
      %v347 = vld [vmem:[%s1 + $0x5c] sm:$0xf]
      %v348 = vld [vmem:[%s1 + $0x60] sm:$0xf]
      %v349 = vld [vmem:[%s1 + $0x64] sm:$0xf]
      %v350 = vld [vmem:[%s1 + $0x68] sm:$0xf]
      %v351 = vld [vmem:[%s1 + $0x6c] sm:$0xf]
      %v352 = vld [vmem:[%s1 + $0x70] sm:$0xf]
      %v353 = vld [vmem:[%s1 + $0x74] sm:$0xf]
      %v354 = vld [vmem:[%s1 + $0x78] sm:$0xf]
      %v355 = vld [vmem:[%s1 + $0x7c] sm:$0xf]
      %v356 = vld [vmem:[%s1 + $0x80] sm:$0xf]
      %v357 = vld [vmem:[%s1 + $0x84] sm:$0xf]
      %v358 = vld [vmem:[%s1 + $0x88] sm:$0xf]
      %v359 = vld [vmem:[%s1 + $0x8c] sm:$0xf]
      %v360 = vld [vmem:[%s2] sm:$0x1]
      %v362 = vlaneseq
      %v363 = vshrl.u32 %v362, 7
      %v364 = vsub.s32 0, %v363
      %v365 = vrot.slane %v360, %v364
      %v419 = vunpack.c.l.b16 %v272
      %v420 = vunpack.c.h.b16 %v272
      %v421 = vunpack.c.l.b16 %v273
      %v422 = vunpack.c.l.b16 %v274
      %v423 = vunpack.c.h.b16 %v274
      %v424 = vunpack.c.l.b16 %v275
      %v425 = vunpack.c.l.b16 %v276
      %v426 = vunpack.c.h.b16 %v276
      %v427 = vunpack.c.l.b16 %v277
      %v428 = vunpack.c.l.b16 %v278
      %v429 = vunpack.c.h.b16 %v278
      %v430 = vunpack.c.l.b16 %v279
      %v431 = vunpack.c.l.b16 %v280
      %v432 = vunpack.c.h.b16 %v280
      %v433 = vunpack.c.l.b16 %v281
      %v434 = vunpack.c.l.b16 %v282
      %v435 = vunpack.c.h.b16 %v282
      %v436 = vunpack.c.l.b16 %v283
      %v437 = vunpack.c.l.b16 %v284
      %v438 = vunpack.c.h.b16 %v284
      %v439 = vunpack.c.l.b16 %v285
      %v440 = vunpack.c.l.b16 %v286
      %v441 = vunpack.c.h.b16 %v286
      %v442 = vunpack.c.l.b16 %v287
      %v443 = vunpack.c.l.b16 %v288
      %v444 = vunpack.c.h.b16 %v288
      %v445 = vunpack.c.l.b16 %v289
      %v446 = vunpack.c.l.b16 %v290
      %v447 = vunpack.c.h.b16 %v290
      %v448 = vunpack.c.l.b16 %v291
      %v449 = vunpack.c.l.b16 %v292
      %v450 = vunpack.c.h.b16 %v292
      %v451 = vunpack.c.l.b16 %v293
      %v452 = vunpack.c.l.b16 %v294
      %v453 = vunpack.c.h.b16 %v294
      %v454 = vunpack.c.l.b16 %v295
      %v455 = vunpack.c.l.b16 %v296
      %v456 = vunpack.c.h.b16 %v296
      %v457 = vunpack.c.l.b16 %v297
      %v458 = vunpack.c.l.b16 %v298
      %v459 = vunpack.c.h.b16 %v298
      %v460 = vunpack.c.l.b16 %v299
      %v461 = vunpack.c.l.b16 %v300
      %v462 = vunpack.c.h.b16 %v300
      %v463 = vunpack.c.l.b16 %v301
      %v464 = vunpack.c.l.b16 %v302
      %v465 = vunpack.c.h.b16 %v302
      %v466 = vunpack.c.l.b16 %v303
      %v467 = vunpack.c.l.b16 %v304
      %v468 = vunpack.c.h.b16 %v304
      %v469 = vunpack.c.l.b16 %v305
      %v470 = vunpack.c.l.b16 %v306
      %v471 = vunpack.c.h.b16 %v306
      %v472 = vunpack.c.l.b16 %v307
      %v473 = vunpack.c.l.b16 %v308
      %v474 = vunpack.c.h.b16 %v308
      %v475 = vunpack.c.l.b16 %v309
      %v476 = vunpack.c.l.b16 %v310
      %v477 = vunpack.c.h.b16 %v310
      %v478 = vunpack.c.l.b16 %v311
      %v479 = vunpack.c.l.b16 %v312
      %v480 = vunpack.c.h.b16 %v312
      %v481 = vunpack.c.l.b16 %v313
      %v482 = vunpack.c.l.b16 %v314
      %v483 = vunpack.c.h.b16 %v314
      %v484 = vunpack.c.l.b16 %v315
      %v485 = vunpack.c.l.b16 %v316
      %v486 = vunpack.c.h.b16 %v316
      %v487 = vunpack.c.l.b16 %v317
      %v488 = vunpack.c.l.b16 %v318
      %v489 = vunpack.c.h.b16 %v318
      %v490 = vunpack.c.l.b16 %v319
      %v491 = vunpack.c.l.b16 %v320
      %v492 = vunpack.c.h.b16 %v320
      %v493 = vunpack.c.l.b16 %v321
      %v494 = vunpack.c.l.b16 %v322
      %v495 = vunpack.c.h.b16 %v322
      %v496 = vunpack.c.l.b16 %v323
      %v497 = vpack.c.b16 %v422, %v419
      %v498 = vpack.c.b16 %v423, %v420
      %v499 = vpack.c.b16 %v424, %v421
      %v500 = vpack.c.b16 %v428, %v425
      %v501 = vpack.c.b16 %v429, %v426
      %v502 = vpack.c.b16 %v430, %v427
      %v503 = vpack.c.b16 %v434, %v431
      %v504 = vpack.c.b16 %v435, %v432
      %v505 = vpack.c.b16 %v436, %v433
      %v506 = vpack.c.b16 %v440, %v437
      %v507 = vpack.c.b16 %v441, %v438
      %v508 = vpack.c.b16 %v442, %v439
      %v509 = vpack.c.b16 %v446, %v443
      %v510 = vpack.c.b16 %v447, %v444
      %v511 = vpack.c.b16 %v448, %v445
      %v512 = vpack.c.b16 %v452, %v449
      %v513 = vpack.c.b16 %v453, %v450
      %v514 = vpack.c.b16 %v454, %v451
      %v515 = vpack.c.b16 %v458, %v455
      %v516 = vpack.c.b16 %v459, %v456
      %v517 = vpack.c.b16 %v460, %v457
      %v518 = vpack.c.b16 %v464, %v461
      %v519 = vpack.c.b16 %v465, %v462
      %v520 = vpack.c.b16 %v466, %v463
      %v521 = vpack.c.b16 %v470, %v467
      %v522 = vpack.c.b16 %v471, %v468
      %v523 = vpack.c.b16 %v472, %v469
      %v524 = vpack.c.b16 %v476, %v473
      %v525 = vpack.c.b16 %v477, %v474
      %v526 = vpack.c.b16 %v478, %v475
      %v527 = vpack.c.b16 %v482, %v479
      %v528 = vpack.c.b16 %v483, %v480
      %v529 = vpack.c.b16 %v484, %v481
      %v530 = vpack.c.b16 %v488, %v485
      %v531 = vpack.c.b16 %v489, %v486
      %v532 = vpack.c.b16 %v490, %v487
      %v533 = vpack.c.b16 %v494, %v491
      %v534 = vpack.c.b16 %v495, %v492
      %v535 = vpack.c.b16 %v496, %v493
      %v598 = vunpack.c.l.b16 %v324
      %v599 = vunpack.c.l.b16 %v325
      %v600 = vunpack.c.l.b16 %v326
      %v601 = vunpack.c.l.b16 %v327
      %v602 = vunpack.c.l.b16 %v328
      %v603 = vunpack.c.l.b16 %v329
      %v604 = vunpack.c.l.b16 %v330
      %v605 = vunpack.c.l.b16 %v331
      %v606 = vunpack.c.l.b16 %v332
      %v607 = vunpack.c.l.b16 %v333
      %v608 = vunpack.c.l.b16 %v334
      %v609 = vunpack.c.l.b16 %v335
      %v610 = vunpack.c.l.b16 %v336
      %v611 = vunpack.c.l.b16 %v337
      %v612 = vunpack.c.l.b16 %v338
      %v613 = vunpack.c.l.b16 %v339
      %v614 = vunpack.c.l.b16 %v340
      %v615 = vunpack.c.l.b16 %v341
      %v616 = vunpack.c.l.b16 %v342
      %v617 = vunpack.c.l.b16 %v343
      %v618 = vunpack.c.l.b16 %v344
      %v619 = vunpack.c.l.b16 %v345
      %v620 = vunpack.c.l.b16 %v346
      %v621 = vunpack.c.l.b16 %v347
      %v622 = vunpack.c.l.b16 %v348
      %v623 = vunpack.c.l.b16 %v349
      %v624 = vunpack.c.l.b16 %v350
      %v625 = vunpack.c.l.b16 %v351
      %v626 = vunpack.c.l.b16 %v352
      %v627 = vunpack.c.l.b16 %v353
      %v628 = vunpack.c.l.b16 %v354
      %v629 = vunpack.c.l.b16 %v355
      %v630 = vunpack.c.l.b16 %v356
      %v631 = vunpack.c.l.b16 %v357
      %v632 = vunpack.c.l.b16 %v358
      %v633 = vunpack.c.l.b16 %v359
      %v634 = vpack.c.b16 %v599, %v598
      %v635 = vpack.c.b16 %v601, %v600
      %v636 = vpack.c.b16 %v603, %v602
      %v637 = vpack.c.b16 %v605, %v604
      %v638 = vpack.c.b16 %v607, %v606
      %v639 = vpack.c.b16 %v609, %v608
      %v640 = vpack.c.b16 %v611, %v610
      %v641 = vpack.c.b16 %v613, %v612
      %v642 = vpack.c.b16 %v615, %v614
      %v643 = vpack.c.b16 %v617, %v616
      %v644 = vpack.c.b16 %v619, %v618
      %v645 = vpack.c.b16 %v621, %v620
      %v646 = vpack.c.b16 %v623, %v622
      %v647 = vpack.c.b16 %v625, %v624
      %v648 = vpack.c.b16 %v627, %v626
      %v649 = vpack.c.b16 %v629, %v628
      %v650 = vpack.c.b16 %v631, %v630
      %v651 = vpack.c.b16 %v633, %v632
      %vm670 = vcmask 261120
      %v672 = vsel %vm670, %v499, 0
      %v675 = vsel %vm670, %v502, 0
      %v678 = vsel %vm670, %v505, 0
      %v681 = vsel %vm670, %v508, 0
      %v684 = vsel %vm670, %v511, 0
      %v687 = vsel %vm670, %v514, 0
      %v690 = vsel %vm670, %v517, 0
      %v693 = vsel %vm670, %v520, 0
      %v696 = vsel %vm670, %v523, 0
      %v699 = vsel %vm670, %v526, 0
      %v702 = vsel %vm670, %v529, 0
      %v705 = vsel %vm670, %v532, 0
      %v708 = vsel %vm670, %v535, 0
      %710 = vmatprep.subr.bf16.mxu0 0
      %711 = vmatpush1.bf16.msra.mxu0 %v634
      %712 = vmatprep.subr.bf16.mxu0 0
      %713 = vmatpush1.bf16.msra.mxu0 %v635
      %714 = vmatprep.subr.bf16.mxu0 0
      %715 = vmatpush1.bf16.msra.mxu0 %v636
      %716 = vmatprep.subr.bf16.mxu0 0
      %717 = vmatpush1.bf16.msra.mxu0 %v637
      %718 = vmatprep.subr.bf16.mxu0 0
      %719 = vmatpush1.bf16.msra.mxu0 %v638
      %720 = vmatprep.subr.bf16.mxu0 0
      %721 = vmatpush1.bf16.msra.mxu0 %v639
      %722 = vmatprep.subr.bf16.mxu0 0
      %723 = vmatpush1.bf16.msra.mxu0 %v640
      %724 = vmatprep.subr.bf16.mxu0 0
      %725 = vmatpush1.bf16.msra.mxu0 %v641
      %726 = vmatprep.subr.bf16.mxu0 0
      %727 = vmatpush1.bf16.msra.mxu0 %v642
      %728 = vmatprep.subr.bf16.mxu0 0
      %729 = vmatpush1.bf16.msra.mxu0 %v643
      %730 = vmatprep.subr.bf16.mxu0 0
      %731 = vmatpush1.bf16.msra.mxu0 %v644
      %732 = vmatprep.subr.bf16.mxu0 0
      %733 = vmatpush1.bf16.msra.mxu0 %v645
      %734 = vmatprep.subr.bf16.mxu0 0
      %735 = vmatpush1.bf16.msra.mxu0 %v646
      %736 = vmatprep.subr.bf16.mxu0 0
      %737 = vmatpush1.bf16.msra.mxu0 %v647
      %738 = vmatprep.subr.bf16.mxu0 0
      %739 = vmatpush1.bf16.msra.mxu0 %v648
      %740 = vmatprep.subr.bf16.mxu0 0
      %741 = vmatpush1.bf16.msra.mxu0 %v649
      %742 = vmatprep.mubr.bf16.mxu0 %v498
      %743 = vmatmul.mubr.bf16.gmra.mrb[0].mxu0 %v497
      %v744 = vpop.f32.mrb[0].mxu0
      %v745 = vadd.f32 %v365, %v744
      %v746 = vpop.f32.mrb[0].mxu0
      %v747 = vpop.f32.mrb[0].mxu0
      %v748 = vadd.f32 %v365, %v747
      %v749 = vpop.f32.mrb[0].mxu0
      %750 = vmatprep.mubr.bf16.mxu0 %v501
      %751 = vmatmul.mubr.bf16.gmra.mrb[0].mxu0 %v500
      %v752 = vpop.f32.mrb[0].mxu0
      %v753 = vadd.f32 %v365, %v752
      %v754 = vpop.f32.mrb[0].mxu0
      %v755 = vpop.f32.mrb[0].mxu0
      %v756 = vadd.f32 %v365, %v755
      %v757 = vpop.f32.mrb[0].mxu0
      %758 = vmatprep.mubr.bf16.mxu0 %v504
      %759 = vmatmul.mubr.bf16.gmra.mrb[0].mxu0 %v503
      %v760 = vpop.f32.mrb[0].mxu0
      %v761 = vadd.f32 %v365, %v760
      %v762 = vpop.f32.mrb[0].mxu0
      %v763 = vpop.f32.mrb[0].mxu0
      %v764 = vadd.f32 %v365, %v763
      %v765 = vpop.f32.mrb[0].mxu0
      %766 = vmatprep.mubr.bf16.mxu0 %v507
      %767 = vmatmul.mubr.bf16.gmra.mrb[0].mxu0 %v506
      %v768 = vpop.f32.mrb[0].mxu0
      %v769 = vadd.f32 %v365, %v768
      %v770 = vpop.f32.mrb[0].mxu0
      %v771 = vpop.f32.mrb[0].mxu0
      %v772 = vadd.f32 %v365, %v771
      %v773 = vpop.f32.mrb[0].mxu0
      %774 = vmatprep.mubr.bf16.mxu0 %v510
      %775 = vmatmul.mubr.bf16.gmra.mrb[0].mxu0 %v509
      %v776 = vpop.f32.mrb[0].mxu0
      %v777 = vadd.f32 %v365, %v776
      %v778 = vpop.f32.mrb[0].mxu0
      %v779 = vpop.f32.mrb[0].mxu0
      %v780 = vadd.f32 %v365, %v779
      %v781 = vpop.f32.mrb[0].mxu0
      %782 = vmatprep.mubr.bf16.mxu0 %v513
      %783 = vmatmul.mubr.bf16.gmra.mrb[0].mxu0 %v512
      %v784 = vpop.f32.mrb[0].mxu0
      %v785 = vadd.f32 %v365, %v784
      %v786 = vpop.f32.mrb[0].mxu0
      %v787 = vpop.f32.mrb[0].mxu0
      %v788 = vadd.f32 %v365, %v787
      %v789 = vpop.f32.mrb[0].mxu0
      %790 = vmatprep.mubr.bf16.mxu0 %v516
      %791 = vmatmul.mubr.bf16.gmra.mrb[0].mxu0 %v515
      %v792 = vpop.f32.mrb[0].mxu0
      %v793 = vadd.f32 %v365, %v792
      %v794 = vpop.f32.mrb[0].mxu0
      %v795 = vpop.f32.mrb[0].mxu0
      %v796 = vadd.f32 %v365, %v795
      %v797 = vpop.f32.mrb[0].mxu0
      %798 = vmatprep.mubr.bf16.mxu0 %v519
      %799 = vmatmul.mubr.bf16.gmra.mrb[0].mxu0 %v518
      %v800 = vpop.f32.mrb[0].mxu0
      %v801 = vadd.f32 %v365, %v800
      %v802 = vpop.f32.mrb[0].mxu0
      %v803 = vpop.f32.mrb[0].mxu0
      %v804 = vadd.f32 %v365, %v803
      %v805 = vpop.f32.mrb[0].mxu0
      %806 = vmatprep.mubr.bf16.mxu0 %v522
      %807 = vmatmul.mubr.bf16.gmra.mrb[0].mxu0 %v521
      %v808 = vpop.f32.mrb[0].mxu0
      %v809 = vadd.f32 %v365, %v808
      %v810 = vpop.f32.mrb[0].mxu0
      %v811 = vpop.f32.mrb[0].mxu0
      %v812 = vadd.f32 %v365, %v811
      %v813 = vpop.f32.mrb[0].mxu0
      %814 = vmatprep.mubr.bf16.mxu0 %v525
      %815 = vmatmul.mubr.bf16.gmra.mrb[0].mxu0 %v524
      %v816 = vpop.f32.mrb[0].mxu0
      %v817 = vadd.f32 %v365, %v816
      %v818 = vpop.f32.mrb[0].mxu0
      %v819 = vpop.f32.mrb[0].mxu0
      %v820 = vadd.f32 %v365, %v819
      %v821 = vpop.f32.mrb[0].mxu0
      %822 = vmatprep.mubr.bf16.mxu0 %v528
      %823 = vmatmul.mubr.bf16.gmra.mrb[0].mxu0 %v527
      %v824 = vpop.f32.mrb[0].mxu0
      %v825 = vadd.f32 %v365, %v824
      %v826 = vpop.f32.mrb[0].mxu0
      %v827 = vpop.f32.mrb[0].mxu0
      %v828 = vadd.f32 %v365, %v827
      %v829 = vpop.f32.mrb[0].mxu0
      %830 = vmatprep.mubr.bf16.mxu0 %v531
      %831 = vmatmul.mubr.bf16.gmra.mrb[0].mxu0 %v530
      %v832 = vpop.f32.mrb[0].mxu0
      %v833 = vadd.f32 %v365, %v832
      %v834 = vpop.f32.mrb[0].mxu0
      %v835 = vpop.f32.mrb[0].mxu0
      %v836 = vadd.f32 %v365, %v835
      %v837 = vpop.f32.mrb[0].mxu0
      %838 = vmatprep.mubr.bf16.mxu0 %v534
      %839 = vmatmul.mubr.bf16.gmra.mrb[0].mxu0 %v533
      %v840 = vpop.f32.mrb[0].mxu0
      %v841 = vadd.f32 %v365, %v840
      %v842 = vpop.f32.mrb[0].mxu0
      %v843 = vpop.f32.mrb[0].mxu0
      %v844 = vadd.f32 %v365, %v843
      %v845 = vpop.f32.mrb[0].mxu0
      %846 = vdwg.mxu0
      %847 = vmatprep.subr.bf16.mxu0 0
      %848 = vmatpush1.bf16.msra.mxu0 %v650
      %849 = vmatprep.subr.bf16.mxu0 0
      %850 = vmatpush1.bf16.msra.mxu0 %v651
      %851 = vmatprep.subr.bf16.mxu0 0
      %852 = vmatpush1.bf16.msra.mxu0 0
      %853 = vmatprep.subr.bf16.mxu0 0
      %854 = vmatpush1.bf16.msra.mxu0 0
      %855 = vmatprep.subr.bf16.mxu0 0
      %856 = vmatpush1.bf16.msra.mxu0 0
      %857 = vmatprep.subr.bf16.mxu0 0
      %858 = vmatpush1.bf16.msra.mxu0 0
      %859 = vmatprep.subr.bf16.mxu0 0
      %860 = vmatpush1.bf16.msra.mxu0 0
      %861 = vmatprep.subr.bf16.mxu0 0
      %862 = vmatpush1.bf16.msra.mxu0 0
      %863 = vmatprep.subr.bf16.mxu0 0
      %864 = vmatpush1.bf16.msra.mxu0 0
      %865 = vmatprep.subr.bf16.mxu0 0
      %866 = vmatpush1.bf16.msra.mxu0 0
      %867 = vmatprep.subr.bf16.mxu0 0
      %868 = vmatpush1.bf16.msra.mxu0 0
      %869 = vmatprep.subr.bf16.mxu0 0
      %870 = vmatpush1.bf16.msra.mxu0 0
      %871 = vmatprep.subr.bf16.mxu0 0
      %872 = vmatpush1.bf16.msra.mxu0 0
      %873 = vmatprep.subr.bf16.mxu0 0
      %874 = vmatpush1.bf16.msra.mxu0 0
      %875 = vmatprep.subr.bf16.mxu0 0
      %876 = vmatpush1.bf16.msra.mxu0 0
      %877 = vmatprep.subr.bf16.mxu0 0
      %878 = vmatpush1.bf16.msra.mxu0 0
      %879 = vmatprep.mubr.bf16.mxu0 0
      %880 = vmatmul.mubr.bf16.gmra.mrb[0].mxu0 %v672
      %v881 = vpop.f32.mrb[0].mxu0
      %v882 = vadd.f32 %v745, %v881
      %v883 = vpop.f32.mrb[0].mxu0
      %v884 = vpop.f32.mrb[0].mxu0
      %v885 = vadd.f32 %v748, %v884
      %v886 = vpop.f32.mrb[0].mxu0
      %887 = vmatprep.mubr.bf16.mxu0 0
      %888 = vmatmul.mubr.bf16.gmra.mrb[0].mxu0 %v675
      %v889 = vpop.f32.mrb[0].mxu0
      %v890 = vadd.f32 %v753, %v889
      %v891 = vpop.f32.mrb[0].mxu0
      %v892 = vpop.f32.mrb[0].mxu0
      %v893 = vadd.f32 %v756, %v892
      %v894 = vpop.f32.mrb[0].mxu0
      %895 = vmatprep.mubr.bf16.mxu0 0
      %896 = vmatmul.mubr.bf16.gmra.mrb[0].mxu0 %v678
      %v897 = vpop.f32.mrb[0].mxu0
      %v898 = vadd.f32 %v761, %v897
      %v899 = vpop.f32.mrb[0].mxu0
      %v900 = vpop.f32.mrb[0].mxu0
      %v901 = vadd.f32 %v764, %v900
      %v902 = vpop.f32.mrb[0].mxu0
      %903 = vmatprep.mubr.bf16.mxu0 0
      %904 = vmatmul.mubr.bf16.gmra.mrb[0].mxu0 %v681
      %v905 = vpop.f32.mrb[0].mxu0
      %v906 = vadd.f32 %v769, %v905
      %v907 = vpop.f32.mrb[0].mxu0
      %v908 = vpop.f32.mrb[0].mxu0
      %v909 = vadd.f32 %v772, %v908
      %v910 = vpop.f32.mrb[0].mxu0
      %911 = vmatprep.mubr.bf16.mxu0 0
      %912 = vmatmul.mubr.bf16.gmra.mrb[0].mxu0 %v684
      %v913 = vpop.f32.mrb[0].mxu0
      %v914 = vadd.f32 %v777, %v913
      %v915 = vpop.f32.mrb[0].mxu0
      %v916 = vpop.f32.mrb[0].mxu0
      %v917 = vadd.f32 %v780, %v916
      %v918 = vpop.f32.mrb[0].mxu0
      %919 = vmatprep.mubr.bf16.mxu0 0
      %920 = vmatmul.mubr.bf16.gmra.mrb[0].mxu0 %v687
      %v921 = vpop.f32.mrb[0].mxu0
      %v922 = vadd.f32 %v785, %v921
      %v923 = vpop.f32.mrb[0].mxu0
      %v924 = vpop.f32.mrb[0].mxu0
      %v925 = vadd.f32 %v788, %v924
      %v926 = vpop.f32.mrb[0].mxu0
      %927 = vmatprep.mubr.bf16.mxu0 0
      %928 = vmatmul.mubr.bf16.gmra.mrb[0].mxu0 %v690
      %v929 = vpop.f32.mrb[0].mxu0
      %v930 = vadd.f32 %v793, %v929
      %v931 = vpop.f32.mrb[0].mxu0
      %v932 = vpop.f32.mrb[0].mxu0
      %v933 = vadd.f32 %v796, %v932
      %v934 = vpop.f32.mrb[0].mxu0
      %935 = vmatprep.mubr.bf16.mxu0 0
      %936 = vmatmul.mubr.bf16.gmra.mrb[0].mxu0 %v693
      %v937 = vpop.f32.mrb[0].mxu0
      %v938 = vadd.f32 %v801, %v937
      %v939 = vpop.f32.mrb[0].mxu0
      %v940 = vpop.f32.mrb[0].mxu0
      %v941 = vadd.f32 %v804, %v940
      %v942 = vpop.f32.mrb[0].mxu0
      %943 = vmatprep.mubr.bf16.mxu0 0
      %944 = vmatmul.mubr.bf16.gmra.mrb[0].mxu0 %v696
      %v945 = vpop.f32.mrb[0].mxu0
      %v946 = vadd.f32 %v809, %v945
      %v947 = vpop.f32.mrb[0].mxu0
      %v948 = vpop.f32.mrb[0].mxu0
      %v949 = vadd.f32 %v812, %v948
      %v950 = vpop.f32.mrb[0].mxu0
      %951 = vmatprep.mubr.bf16.mxu0 0
      %952 = vmatmul.mubr.bf16.gmra.mrb[0].mxu0 %v699
      %v953 = vpop.f32.mrb[0].mxu0
      %v954 = vadd.f32 %v817, %v953
      %v955 = vpop.f32.mrb[0].mxu0
      %v956 = vpop.f32.mrb[0].mxu0
      %v957 = vadd.f32 %v820, %v956
      %v958 = vpop.f32.mrb[0].mxu0
      %959 = vmatprep.mubr.bf16.mxu0 0
      %960 = vmatmul.mubr.bf16.gmra.mrb[0].mxu0 %v702
      %v961 = vpop.f32.mrb[0].mxu0
      %v962 = vadd.f32 %v825, %v961
      %v963 = vpop.f32.mrb[0].mxu0
      %v964 = vpop.f32.mrb[0].mxu0
      %v965 = vadd.f32 %v828, %v964
      %v966 = vpop.f32.mrb[0].mxu0
      %967 = vmatprep.mubr.bf16.mxu0 0
      %968 = vmatmul.mubr.bf16.gmra.mrb[0].mxu0 %v705
      %v969 = vpop.f32.mrb[0].mxu0
      %v970 = vadd.f32 %v833, %v969
      %v971 = vpop.f32.mrb[0].mxu0
      %v972 = vpop.f32.mrb[0].mxu0
      %v973 = vadd.f32 %v836, %v972
      %v974 = vpop.f32.mrb[0].mxu0
      %975 = vmatprep.mubr.bf16.mxu0 0
      %976 = vmatmul.mubr.bf16.gmra.mrb[0].mxu0 %v708
      %v977 = vpop.f32.mrb[0].mxu0
      %v978 = vadd.f32 %v841, %v977
      %v979 = vpop.f32.mrb[0].mxu0
      %v980 = vpop.f32.mrb[0].mxu0
      %v981 = vadd.f32 %v844, %v980
      %v982 = vpop.f32.mrb[0].mxu0
      %983 = vdwg.mxu0
      %v984 = vpack.c.bf16 %v885, %v882
      %v985 = vpack.c.bf16 %v893, %v890
      %v986 = vpack.c.bf16 %v901, %v898
      %v987 = vpack.c.bf16 %v909, %v906
      %v988 = vpack.c.bf16 %v917, %v914
      %v989 = vpack.c.bf16 %v925, %v922
      %v990 = vpack.c.bf16 %v933, %v930
      %v991 = vpack.c.bf16 %v941, %v938
      %v992 = vpack.c.bf16 %v949, %v946
      %v993 = vpack.c.bf16 %v957, %v954
      %v994 = vpack.c.bf16 %v965, %v962
      %v995 = vpack.c.bf16 %v973, %v970
      %v996 = vpack.c.bf16 %v981, %v978
      %v1010 = vunpack.c.l.b16 %v984
      %v1011 = vunpack.c.h.b16 %v984
      %v1012 = vunpack.c.l.b16 %v985
      %v1013 = vunpack.c.h.b16 %v985
      %v1014 = vunpack.c.l.b16 %v986
      %v1015 = vunpack.c.h.b16 %v986
      %v1016 = vunpack.c.l.b16 %v987
      %v1017 = vunpack.c.h.b16 %v987
      %v1018 = vunpack.c.l.b16 %v988
      %v1019 = vunpack.c.h.b16 %v988
      %v1020 = vunpack.c.l.b16 %v989
      %v1021 = vunpack.c.h.b16 %v989
      %v1022 = vunpack.c.l.b16 %v990
      %v1023 = vunpack.c.h.b16 %v990
      %v1024 = vunpack.c.l.b16 %v991
      %v1025 = vunpack.c.h.b16 %v991
      %v1026 = vunpack.c.l.b16 %v992
      %v1027 = vunpack.c.h.b16 %v992
      %v1028 = vunpack.c.l.b16 %v993
      %v1029 = vunpack.c.h.b16 %v993
      %v1030 = vunpack.c.l.b16 %v994
      %v1031 = vunpack.c.h.b16 %v994
      %v1032 = vunpack.c.l.b16 %v995
      %v1033 = vunpack.c.h.b16 %v995
      %v1034 = vunpack.c.l.b16 %v996
      %v1035 = vunpack.c.h.b16 %v996
      %v1036 = vpack.c.b16 %v1010, %v1010
      %v1037 = vpack.c.b16 %v1011, %v1011
      %v1038 = vpack.c.b16 %v1012, %v1012
      %v1039 = vpack.c.b16 %v1013, %v1013
      %v1040 = vpack.c.b16 %v1014, %v1014
      %v1041 = vpack.c.b16 %v1015, %v1015
      %v1042 = vpack.c.b16 %v1016, %v1016
      %v1043 = vpack.c.b16 %v1017, %v1017
      %v1044 = vpack.c.b16 %v1018, %v1018
      %v1045 = vpack.c.b16 %v1019, %v1019
      %v1046 = vpack.c.b16 %v1020, %v1020
      %v1047 = vpack.c.b16 %v1021, %v1021
      %v1048 = vpack.c.b16 %v1022, %v1022
      %v1049 = vpack.c.b16 %v1023, %v1023
      %v1050 = vpack.c.b16 %v1024, %v1024
      %v1051 = vpack.c.b16 %v1025, %v1025
      %v1052 = vpack.c.b16 %v1026, %v1026
      %v1053 = vpack.c.b16 %v1027, %v1027
      %v1054 = vpack.c.b16 %v1028, %v1028
      %v1055 = vpack.c.b16 %v1029, %v1029
      %v1056 = vpack.c.b16 %v1030, %v1030
      %v1057 = vpack.c.b16 %v1031, %v1031
      %v1058 = vpack.c.b16 %v1032, %v1032
      %v1059 = vpack.c.b16 %v1033, %v1033
      %v1060 = vpack.c.b16 %v1034, %v1034
      %v1061 = vpack.c.b16 %v1035, %v1035
      %1088 = vst [vmem:[%s264] sm:$0xf] %v1036
      %1089 = vst [vmem:[%s264 + $0x4] sm:$0xf] %v1037
      %1090 = vst [vmem:[%s264 + $0x8] sm:$0xf] %v1038
      %1091 = vst [vmem:[%s264 + $0xc] sm:$0xf] %v1039
      %1092 = vst [vmem:[%s264 + $0x10] sm:$0xf] %v1040
      %1093 = vst [vmem:[%s264 + $0x14] sm:$0xf] %v1041
      %1094 = vst [vmem:[%s264 + $0x18] sm:$0xf] %v1042
      %1095 = vst [vmem:[%s264 + $0x1c] sm:$0xf] %v1043
      %1096 = vst [vmem:[%s264 + $0x20] sm:$0xf] %v1044
      %1097 = vst [vmem:[%s264 + $0x24] sm:$0xf] %v1045
      %1098 = vst [vmem:[%s264 + $0x28] sm:$0xf] %v1046
      %1099 = vst [vmem:[%s264 + $0x2c] sm:$0xf] %v1047
      %1100 = vst [vmem:[%s264 + $0x30] sm:$0xf] %v1048
      %1101 = vst [vmem:[%s264 + $0x34] sm:$0xf] %v1049
      %1102 = vst [vmem:[%s264 + $0x38] sm:$0xf] %v1050
      %1103 = vst [vmem:[%s264 + $0x3c] sm:$0xf] %v1051
      %1104 = vst [vmem:[%s264 + $0x40] sm:$0xf] %v1052
      %1105 = vst [vmem:[%s264 + $0x44] sm:$0xf] %v1053
      %1106 = vst [vmem:[%s264 + $0x48] sm:$0xf] %v1054
      %1107 = vst [vmem:[%s264 + $0x4c] sm:$0xf] %v1055
      %1108 = vst [vmem:[%s264 + $0x50] sm:$0xf] %v1056
      %1109 = vst [vmem:[%s264 + $0x54] sm:$0xf] %v1057
      %1110 = vst [vmem:[%s264 + $0x58] sm:$0xf] %v1058
      %1111 = vst [vmem:[%s264 + $0x5c] sm:$0xf] %v1059
      %1112 = vst [vmem:[%s264 + $0x60] sm:$0xf] %v1060
      %1113 = vst [vmem:[%s264 + $0x64] sm:$0xf] %v1061
      %p1114 = scmp.eq.s32.totalorder %s18, 0
      // Predicated region
      $region41: #{a_call__.1} parent=39 // pred_check
        %p1115 = pneg %p1114
      $region42: #{a_call__.1} parent=39 // pred_check_branch
        %1117 = sbr.rel (%p1115) target = $region44
      $region43: #{a_call__.1} parent=39 // pred_region
        %v1118 = vld [vmem:[%s3] sm:$0xff]
        %v1119 = vld [vmem:[%s3 + $0x8] sm:$0xff]
        %v1120 = vld [vmem:[%s3 + $0x10] sm:$0xff]
        %v1121 = vld [vmem:[%s3 + $0x18] sm:$0xf]
        %v1122 = vld [vmem:[%s4] sm:$0xff]
        %vm1123 = vcmp.lt.f32.partialorder %v1122, 0.0
        %v1124 = vrcp.pop 4.0
        %v1125 = vmul.f32 %v1122, %v1124
        %v1126 = vsel %vm1123, %v1122, %v1125
        %v1131 = vlaneseq
        %v1132 = vshrl.u32 %v1131, 7
        %v1133 = vsub.s32 0, %v1132
        %v1134 = vrot.slane %v1118, %v1133
        %v1135 = vlaneseq
        %v1136 = vshrl.u32 %v1135, 7
        %v1137 = vsub.s32 4, %v1136
        %v1138 = vrot.slane %v1118, %v1137
        %v1139 = vlaneseq
        %v1140 = vshrl.u32 %v1139, 7
        %v1141 = vsub.s32 0, %v1140
        %v1142 = vrot.slane %v1119, %v1141
        %v1143 = vlaneseq
        %v1144 = vshrl.u32 %v1143, 7
        %v1145 = vsub.s32 4, %v1144
        %v1146 = vrot.slane %v1119, %v1145
        %v1147 = vlaneseq
        %v1148 = vshrl.u32 %v1147, 7
        %v1149 = vsub.s32 0, %v1148
        %v1150 = vrot.slane %v1120, %v1149
        %v1151 = vlaneseq
        %v1152 = vshrl.u32 %v1151, 7
        %v1153 = vsub.s32 4, %v1152
        %v1154 = vrot.slane %v1120, %v1153
        %v1155 = vlaneseq
        %v1156 = vshrl.u32 %v1155, 7
        %v1157 = vsub.s32 0, %v1156
        %v1158 = vrot.slane %v1121, %v1157
        %v1166 = vlaneseq
        %v1167 = vshrl.u32 %v1166, 7
        %v1168 = vsub.s32 0, %v1167
        %v1169 = vrot.slane %v1134, %v1168
        %v1170 = vlaneseq
        %v1171 = vshrl.u32 %v1170, 7
        %v1172 = vsub.s32 0, %v1171
        %v1173 = vrot.slane %v1138, %v1172
        %v1174 = vlaneseq
        %v1175 = vshrl.u32 %v1174, 7
        %v1176 = vsub.s32 0, %v1175
        %v1177 = vrot.slane %v1142, %v1176
        %v1178 = vlaneseq
        %v1179 = vshrl.u32 %v1178, 7
        %v1180 = vsub.s32 0, %v1179
        %v1181 = vrot.slane %v1146, %v1180
        %v1182 = vlaneseq
        %v1183 = vshrl.u32 %v1182, 7
        %v1184 = vsub.s32 0, %v1183
        %v1185 = vrot.slane %v1150, %v1184
        %v1186 = vlaneseq
        %v1187 = vshrl.u32 %v1186, 7
        %v1188 = vsub.s32 0, %v1187
        %v1189 = vrot.slane %v1154, %v1188
        %v1190 = vlaneseq
        %v1191 = vshrl.u32 %v1190, 7
        %v1192 = vsub.s32 0, %v1191
        %v1193 = vrot.slane %v1158, %v1192
        %1195 = vset.pattern.permute.xlu0 0
        %1196 = vperm.xlu0 %1195, %v1126
        %v1197 = vpop.permute.xlu0 %1196
        %v1199 = vmax.f32 %v1169, %v1197
        %v1200 = vmax.f32 %v1173, %v1197
        %v1201 = vmax.f32 %v1177, %v1197
        %v1202 = vmax.f32 %v1181, %v1197
        %v1203 = vmax.f32 %v1185, %v1197
        %v1204 = vmax.f32 %v1189, %v1197
        %v1205 = vmax.f32 %v1193, %v1197
        %v1206 = vlaneseq
        %v1207 = vshrl.u32 %v1206, 7
        %v1208 = vsub.s32 1, %v1207
        %v1209 = vrot.slane %v1118, %v1208
        %v1210 = vlaneseq
        %v1211 = vshrl.u32 %v1210, 7
        %v1212 = vsub.s32 5, %v1211
        %v1213 = vrot.slane %v1118, %v1212
        %v1214 = vlaneseq
        %v1215 = vshrl.u32 %v1214, 7
        %v1216 = vsub.s32 1, %v1215
        %v1217 = vrot.slane %v1119, %v1216
        %v1218 = vlaneseq
        %v1219 = vshrl.u32 %v1218, 7
        %v1220 = vsub.s32 5, %v1219
        %v1221 = vrot.slane %v1119, %v1220
        %v1222 = vlaneseq
        %v1223 = vshrl.u32 %v1222, 7
        %v1224 = vsub.s32 1, %v1223
        %v1225 = vrot.slane %v1120, %v1224
        %v1226 = vlaneseq
        %v1227 = vshrl.u32 %v1226, 7
        %v1228 = vsub.s32 5, %v1227
        %v1229 = vrot.slane %v1120, %v1228
        %v1230 = vlaneseq
        %v1231 = vshrl.u32 %v1230, 7
        %v1232 = vsub.s32 1, %v1231
        %v1233 = vrot.slane %v1121, %v1232
        %v1241 = vlaneseq
        %v1242 = vshrl.u32 %v1241, 7
        %v1243 = vsub.s32 1, %v1242
        %v1244 = vrot.slane %v1209, %v1243
        %v1245 = vlaneseq
        %v1246 = vshrl.u32 %v1245, 7
        %v1247 = vsub.s32 1, %v1246
        %v1248 = vrot.slane %v1213, %v1247
        %v1249 = vlaneseq
        %v1250 = vshrl.u32 %v1249, 7
        %v1251 = vsub.s32 1, %v1250
        %v1252 = vrot.slane %v1217, %v1251
        %v1253 = vlaneseq
        %v1254 = vshrl.u32 %v1253, 7
        %v1255 = vsub.s32 1, %v1254
        %v1256 = vrot.slane %v1221, %v1255
        %v1257 = vlaneseq
        %v1258 = vshrl.u32 %v1257, 7
        %v1259 = vsub.s32 1, %v1258
        %v1260 = vrot.slane %v1225, %v1259
        %v1261 = vlaneseq
        %v1262 = vshrl.u32 %v1261, 7
        %v1263 = vsub.s32 1, %v1262
        %v1264 = vrot.slane %v1229, %v1263
        %v1265 = vlaneseq
        %v1266 = vshrl.u32 %v1265, 7
        %v1267 = vsub.s32 1, %v1266
        %v1268 = vrot.slane %v1233, %v1267
        %1269 = vset.pattern.permute.xlu0 1
        %1270 = vperm.xlu0 %1269, %v1126
        %v1271 = vpop.permute.xlu0 %1270
        %v1273 = vmax.f32 %v1244, %v1271
        %v1274 = vmax.f32 %v1248, %v1271
        %v1275 = vmax.f32 %v1252, %v1271
        %v1276 = vmax.f32 %v1256, %v1271
        %v1277 = vmax.f32 %v1260, %v1271
        %v1278 = vmax.f32 %v1264, %v1271
        %v1279 = vmax.f32 %v1268, %v1271
        %v1280 = vlaneseq
        %v1281 = vshrl.u32 %v1280, 7
        %v1282 = vsub.s32 2, %v1281
        %v1283 = vrot.slane %v1118, %v1282
        %v1284 = vlaneseq
        %v1285 = vshrl.u32 %v1284, 7
        %v1286 = vsub.s32 6, %v1285
        %v1287 = vrot.slane %v1118, %v1286
        %v1288 = vlaneseq
        %v1289 = vshrl.u32 %v1288, 7
        %v1290 = vsub.s32 2, %v1289
        %v1291 = vrot.slane %v1119, %v1290
        %v1292 = vlaneseq
        %v1293 = vshrl.u32 %v1292, 7
        %v1294 = vsub.s32 6, %v1293
        %v1295 = vrot.slane %v1119, %v1294
        %v1296 = vlaneseq
        %v1297 = vshrl.u32 %v1296, 7
        %v1298 = vsub.s32 2, %v1297
        %v1299 = vrot.slane %v1120, %v1298
        %v1300 = vlaneseq
        %v1301 = vshrl.u32 %v1300, 7
        %v1302 = vsub.s32 6, %v1301
        %v1303 = vrot.slane %v1120, %v1302
        %v1304 = vlaneseq
        %v1305 = vshrl.u32 %v1304, 7
        %v1306 = vsub.s32 2, %v1305
        %v1307 = vrot.slane %v1121, %v1306
        %v1315 = vlaneseq
        %v1316 = vshrl.u32 %v1315, 7
        %v1317 = vsub.s32 2, %v1316
        %v1318 = vrot.slane %v1283, %v1317
        %v1319 = vlaneseq
        %v1320 = vshrl.u32 %v1319, 7
        %v1321 = vsub.s32 2, %v1320
        %v1322 = vrot.slane %v1287, %v1321
        %v1323 = vlaneseq
        %v1324 = vshrl.u32 %v1323, 7
        %v1325 = vsub.s32 2, %v1324
        %v1326 = vrot.slane %v1291, %v1325
        %v1327 = vlaneseq
        %v1328 = vshrl.u32 %v1327, 7
        %v1329 = vsub.s32 2, %v1328
        %v1330 = vrot.slane %v1295, %v1329
        %v1331 = vlaneseq
        %v1332 = vshrl.u32 %v1331, 7
        %v1333 = vsub.s32 2, %v1332
        %v1334 = vrot.slane %v1299, %v1333
        %v1335 = vlaneseq
        %v1336 = vshrl.u32 %v1335, 7
        %v1337 = vsub.s32 2, %v1336
        %v1338 = vrot.slane %v1303, %v1337
        %v1339 = vlaneseq
        %v1340 = vshrl.u32 %v1339, 7
        %v1341 = vsub.s32 2, %v1340
        %v1342 = vrot.slane %v1307, %v1341
        %1343 = vset.pattern.permute.xlu0 2
        %1344 = vperm.xlu0 %1343, %v1126
        %v1345 = vpop.permute.xlu0 %1344
        %v1347 = vmin.f32 %v1318, %v1345
        %v1348 = vmin.f32 %v1322, %v1345
        %v1349 = vmin.f32 %v1326, %v1345
        %v1350 = vmin.f32 %v1330, %v1345
        %v1351 = vmin.f32 %v1334, %v1345
        %v1352 = vmin.f32 %v1338, %v1345
        %v1353 = vmin.f32 %v1342, %v1345
        %v1354 = vlaneseq
        %v1355 = vshrl.u32 %v1354, 7
        %v1356 = vsub.s32 3, %v1355
        %v1357 = vrot.slane %v1118, %v1356
        %v1358 = vlaneseq
        %v1359 = vshrl.u32 %v1358, 7
        %v1360 = vsub.s32 7, %v1359
        %v1361 = vrot.slane %v1118, %v1360
        %v1362 = vlaneseq
        %v1363 = vshrl.u32 %v1362, 7
        %v1364 = vsub.s32 3, %v1363
        %v1365 = vrot.slane %v1119, %v1364
        %v1366 = vlaneseq
        %v1367 = vshrl.u32 %v1366, 7
        %v1368 = vsub.s32 7, %v1367
        %v1369 = vrot.slane %v1119, %v1368
        %v1370 = vlaneseq
        %v1371 = vshrl.u32 %v1370, 7
        %v1372 = vsub.s32 3, %v1371
        %v1373 = vrot.slane %v1120, %v1372
        %v1374 = vlaneseq
        %v1375 = vshrl.u32 %v1374, 7
        %v1376 = vsub.s32 7, %v1375
        %v1377 = vrot.slane %v1120, %v1376
        %v1378 = vlaneseq
        %v1379 = vshrl.u32 %v1378, 7
        %v1380 = vsub.s32 3, %v1379
        %v1381 = vrot.slane %v1121, %v1380
        %v1389 = vlaneseq
        %v1390 = vshrl.u32 %v1389, 7
        %v1391 = vsub.s32 3, %v1390
        %v1392 = vrot.slane %v1357, %v1391
        %v1393 = vlaneseq
        %v1394 = vshrl.u32 %v1393, 7
        %v1395 = vsub.s32 3, %v1394
        %v1396 = vrot.slane %v1361, %v1395
        %v1397 = vlaneseq
        %v1398 = vshrl.u32 %v1397, 7
        %v1399 = vsub.s32 3, %v1398
        %v1400 = vrot.slane %v1365, %v1399
        %v1401 = vlaneseq
        %v1402 = vshrl.u32 %v1401, 7
        %v1403 = vsub.s32 3, %v1402
        %v1404 = vrot.slane %v1369, %v1403
        %v1405 = vlaneseq
        %v1406 = vshrl.u32 %v1405, 7
        %v1407 = vsub.s32 3, %v1406
        %v1408 = vrot.slane %v1373, %v1407
        %v1409 = vlaneseq
        %v1410 = vshrl.u32 %v1409, 7
        %v1411 = vsub.s32 3, %v1410
        %v1412 = vrot.slane %v1377, %v1411
        %v1413 = vlaneseq
        %v1414 = vshrl.u32 %v1413, 7
        %v1415 = vsub.s32 3, %v1414
        %v1416 = vrot.slane %v1381, %v1415
        %1417 = vset.pattern.permute.xlu0 3
        %1418 = vperm.xlu0 %1417, %v1126
        %v1419 = vpop.permute.xlu0 %1418
        %v1421 = vmin.f32 %v1392, %v1419
        %v1422 = vmin.f32 %v1396, %v1419
        %v1423 = vmin.f32 %v1400, %v1419
        %v1424 = vmin.f32 %v1404, %v1419
        %v1425 = vmin.f32 %v1408, %v1419
        %v1426 = vmin.f32 %v1412, %v1419
        %v1427 = vmin.f32 %v1416, %v1419
        %v1428 = vsub.f32 %v1347, %v1199
        %v1429 = vsub.f32 %v1348, %v1200
        %v1430 = vsub.f32 %v1349, %v1201
        %v1431 = vsub.f32 %v1350, %v1202
        %v1432 = vsub.f32 %v1351, %v1203
        %v1433 = vsub.f32 %v1352, %v1204
        %v1434 = vsub.f32 %v1353, %v1205
        %v1435 = vmax.f32 %v1428, 0.0
        %v1436 = vmax.f32 %v1429, 0.0
        %v1437 = vmax.f32 %v1430, 0.0
        %v1438 = vmax.f32 %v1431, 0.0
        %v1439 = vmax.f32 %v1432, 0.0
        %v1440 = vmax.f32 %v1433, 0.0
        %v1441 = vmax.f32 %v1434, 0.0
        %v1442 = vsub.f32 %v1421, %v1273
        %v1443 = vsub.f32 %v1422, %v1274
        %v1444 = vsub.f32 %v1423, %v1275
        %v1445 = vsub.f32 %v1424, %v1276
        %v1446 = vsub.f32 %v1425, %v1277
        %v1447 = vsub.f32 %v1426, %v1278
        %v1448 = vsub.f32 %v1427, %v1279
        %v1449 = vmax.f32 %v1442, 0.0
        %v1450 = vmax.f32 %v1443, 0.0
        %v1451 = vmax.f32 %v1444, 0.0
        %v1452 = vmax.f32 %v1445, 0.0
        %v1453 = vmax.f32 %v1446, 0.0
        %v1454 = vmax.f32 %v1447, 0.0
        %v1455 = vmax.f32 %v1448, 0.0
        %v1456 = vmul.f32 %v1435, %v1449
        %v1457 = vmul.f32 %v1436, %v1450
        %v1458 = vmul.f32 %v1437, %v1451
        %v1459 = vmul.f32 %v1438, %v1452
        %v1460 = vmul.f32 %v1439, %v1453
        %v1461 = vmul.f32 %v1440, %v1454
        %v1462 = vmul.f32 %v1441, %v1455
        %v1463 = vrot.slane %v1118, 6
        %v1464 = vrot.slane %v1119, 6
        %v1465 = vrot.slane %v1120, 6
        %v1466 = vrot.slane %v1121, 6
        %v1471 = vsub.f32 %v1118, %v1463
        %v1472 = vsub.f32 %v1119, %v1464
        %v1473 = vsub.f32 %v1120, %v1465
        %v1474 = vsub.f32 %v1121, %v1466
        %v1479 = vrot.slane %v1471, 5
        %v1480 = vrot.slane %v1479, 4
        %v1481 = vrot.slane %v1472, 5
        %v1482 = vrot.slane %v1481, 4
        %v1483 = vrot.slane %v1473, 5
        %v1484 = vrot.slane %v1483, 4
        %v1485 = vrot.slane %v1474, 5
        %v1486 = vrot.slane %v1485, 4
        %v1491 = vmul.f32 %v1471, %v1480
        %v1492 = vmul.f32 %v1472, %v1482
        %v1493 = vmul.f32 %v1473, %v1484
        %v1494 = vmul.f32 %v1474, %v1486
        %1495 = vrot.lane.b32.xlu0 %v1126, 2
        %v1496 = vpop.permute.xlu0 %1495
        %v1498 = vsub.f32 %v1126, %v1496
        %1500 = vrot.lane.b32.xlu0 %v1498, 127
        %v1501 = vpop.permute.xlu0 %1500
        %v1503 = vmul.f32 %v1498, %v1501
        %v1508 = vlaneseq
        %v1509 = vshrl.u32 %v1508, 7
        %v1510 = vsub.s32 2, %v1509
        %v1511 = vrot.slane %v1491, %v1510
        %v1512 = vlaneseq
        %v1513 = vshrl.u32 %v1512, 7
        %v1514 = vsub.s32 6, %v1513
        %v1515 = vrot.slane %v1491, %v1514
        %v1516 = vlaneseq
        %v1517 = vshrl.u32 %v1516, 7
        %v1518 = vsub.s32 2, %v1517
        %v1519 = vrot.slane %v1492, %v1518
        %v1520 = vlaneseq
        %v1521 = vshrl.u32 %v1520, 7
        %v1522 = vsub.s32 6, %v1521
        %v1523 = vrot.slane %v1492, %v1522
        %v1524 = vlaneseq
        %v1525 = vshrl.u32 %v1524, 7
        %v1526 = vsub.s32 2, %v1525
        %v1527 = vrot.slane %v1493, %v1526
        %v1528 = vlaneseq
        %v1529 = vshrl.u32 %v1528, 7
        %v1530 = vsub.s32 6, %v1529
        %v1531 = vrot.slane %v1493, %v1530
        %v1532 = vlaneseq
        %v1533 = vshrl.u32 %v1532, 7
        %v1534 = vsub.s32 2, %v1533
        %v1535 = vrot.slane %v1494, %v1534
        %v1543 = vlaneseq
        %v1544 = vshrl.u32 %v1543, 7
        %v1545 = vsub.s32 2, %v1544
        %v1546 = vrot.slane %v1511, %v1545
        %v1547 = vlaneseq
        %v1548 = vshrl.u32 %v1547, 7
        %v1549 = vsub.s32 2, %v1548
        %v1550 = vrot.slane %v1515, %v1549
        %v1551 = vlaneseq
        %v1552 = vshrl.u32 %v1551, 7
        %v1553 = vsub.s32 2, %v1552
        %v1554 = vrot.slane %v1519, %v1553
        %v1555 = vlaneseq
        %v1556 = vshrl.u32 %v1555, 7
        %v1557 = vsub.s32 2, %v1556
        %v1558 = vrot.slane %v1523, %v1557
        %v1559 = vlaneseq
        %v1560 = vshrl.u32 %v1559, 7
        %v1561 = vsub.s32 2, %v1560
        %v1562 = vrot.slane %v1527, %v1561
        %v1563 = vlaneseq
        %v1564 = vshrl.u32 %v1563, 7
        %v1565 = vsub.s32 2, %v1564
        %v1566 = vrot.slane %v1531, %v1565
        %v1567 = vlaneseq
        %v1568 = vshrl.u32 %v1567, 7
        %v1569 = vsub.s32 2, %v1568
        %v1570 = vrot.slane %v1535, %v1569
        %1572 = vset.pattern.permute.xlu0 2
        %1573 = vperm.xlu0 %1572, %v1503
        %v1574 = vpop.permute.xlu0 %1573
        %v1576 = vadd.f32 %v1546, %v1574
        %v1577 = vadd.f32 %v1550, %v1574
        %v1578 = vadd.f32 %v1554, %v1574
        %v1579 = vadd.f32 %v1558, %v1574
        %v1580 = vadd.f32 %v1562, %v1574
        %v1581 = vadd.f32 %v1566, %v1574
        %v1582 = vadd.f32 %v1570, %v1574
        %v1583 = vsub.f32 %v1576, %v1456
        %v1584 = vsub.f32 %v1577, %v1457
        %v1585 = vsub.f32 %v1578, %v1458
        %v1586 = vsub.f32 %v1579, %v1459
        %v1587 = vsub.f32 %v1580, %v1460
        %v1588 = vsub.f32 %v1581, %v1461
        %v1589 = vsub.f32 %v1582, %v1462
        %v1590 = vmax.f32 %v1583, 1e-08
        %v1591 = vmax.f32 %v1584, 1e-08
        %v1592 = vmax.f32 %v1585, 1e-08
        %v1593 = vmax.f32 %v1586, 1e-08
        %v1594 = vmax.f32 %v1587, 1e-08
        %v1595 = vmax.f32 %v1588, 1e-08
        %v1596 = vmax.f32 %v1589, 1e-08
        %v1597 = vrcp.pop %v1590
        %v1598 = vmul.f32 %v1456, %v1597
        %v1599 = vrcp.pop %v1591
        %v1600 = vmul.f32 %v1457, %v1599
        %v1601 = vrcp.pop %v1592
        %v1602 = vmul.f32 %v1458, %v1601
        %v1603 = vrcp.pop %v1593
        %v1604 = vmul.f32 %v1459, %v1603
        %v1605 = vrcp.pop %v1594
        %v1606 = vmul.f32 %v1460, %v1605
        %v1607 = vrcp.pop %v1595
        %v1608 = vmul.f32 %v1461, %v1607
        %v1609 = vrcp.pop %v1596
        %v1610 = vmul.f32 %v1462, %v1609
        %v1611 = vmax.f32 %v1598, %v1606
        %v1612 = vmax.f32 %v1600, %v1608
        %v1613 = vmax.f32 %v1602, %v1610
        %v1614 = vmax.f32 %v1611, %v1612
        %v1615 = vmax.f32 %v1613, %v1604
        %v1616 = vmax.f32 %v1614, %v1615
        %1617 = vmax.xlane.f32.xlu0 %v1616
        %v1618 = vpop.xlane.xlu0 %1617
        %vm1619 = vcmp.gt.f32.partialorder %v1598, 0.7
        %vm1620 = vcmp.gt.f32.partialorder %v1600, 0.7
        %vm1621 = vcmp.gt.f32.partialorder %v1602, 0.7
        %vm1622 = vcmp.gt.f32.partialorder %v1604, 0.7
        %vm1623 = vcmp.gt.f32.partialorder %v1606, 0.7
        %vm1624 = vcmp.gt.f32.partialorder %v1608, 0.7
        %vm1625 = vcmp.gt.f32.partialorder %v1610, 0.7
        %vm1626 = vcmp.eq.f32.partialorder %v1598, %v1618
        %vm1627 = vcmp.eq.f32.partialorder %v1600, %v1618
        %vm1628 = vcmp.eq.f32.partialorder %v1602, %v1618
        %vm1629 = vcmp.eq.f32.partialorder %v1604, %v1618
        %vm1630 = vcmp.eq.f32.partialorder %v1606, %v1618
        %vm1631 = vcmp.eq.f32.partialorder %v1608, %v1618
        %vm1632 = vcmp.eq.f32.partialorder %v1610, %v1618
        %vm1633 = vcmp.gt.f32.partialorder %v1618, 0.0
        %v1634 = vsel %vm1633, 1, 0
        %vm1635 = vcmp.eq.s32.totalorder %v1634, 1
        %vm1636 = vmand %vm1626, %vm1635
        %vm1637 = vmand %vm1627, %vm1635
        %vm1638 = vmand %vm1628, %vm1635
        %vm1639 = vmand %vm1629, %vm1635
        %vm1640 = vmand %vm1630, %vm1635
        %vm1641 = vmand %vm1631, %vm1635
        %vm1642 = vmand %vm1632, %vm1635
        %vm1643 = vmor %vm1619, %vm1636
        %vm1644 = vmor %vm1620, %vm1637
        %vm1645 = vmor %vm1621, %vm1638
        %vm1646 = vmor %vm1622, %vm1639
        %vm1647 = vmor %vm1623, %vm1640
        %vm1648 = vmor %vm1624, %vm1641
        %vm1649 = vmor %vm1625, %vm1642
        %1650 = vst [vmem:[%s270] sm:$0xff] %v1598
        %1651 = vst [vmem:[%s270 + $0x8] sm:$0xff] %v1600
        %1652 = vst [vmem:[%s270 + $0x10] sm:$0xff] %v1602
        %1653 = vst [vmem:[%s270 + $0x18] sm:$0xff] %v1604
        %1654 = vst [vmem:[%s270 + $0x20] sm:$0xff] %v1606
        %1655 = vst [vmem:[%s270 + $0x28] sm:$0xff] %v1608
        %1656 = vst [vmem:[%s270 + $0x30] sm:$0xff] %v1610
        %v1657 = vsel %vm1643, 1.0, 0.0
        %v1658 = vsel %vm1644, 1.0, 0.0
        %v1659 = vsel %vm1645, 1.0, 0.0
        %v1660 = vsel %vm1646, 1.0, 0.0
        %v1661 = vsel %vm1647, 1.0, 0.0
        %v1662 = vsel %vm1648, 1.0, 0.0
        %v1663 = vsel %vm1649, 1.0, 0.0
        %s1664 = scalar_lea.vmem %s270, 56
        %1665 = vst [vmem:[%s1664] sm:$0xff] %v1657
        %1666 = vst [vmem:[%s1664 + $0x8] sm:$0xff] %v1658
        %1667 = vst [vmem:[%s1664 + $0x10] sm:$0xff] %v1659
        %1668 = vst [vmem:[%s1664 + $0x18] sm:$0xff] %v1660
        %1669 = vst [vmem:[%s1664 + $0x20] sm:$0xff] %v1661
        %1670 = vst [vmem:[%s1664 + $0x28] sm:$0xff] %v1662
        %1671 = vst [vmem:[%s1664 + $0x30] sm:$0xff] %v1663
        %vm1672 = vcmp.lt.f32.partialorder %v1598, 0.3
        %vm1673 = vcmp.lt.f32.partialorder %v1600, 0.3
        %vm1674 = vcmp.lt.f32.partialorder %v1602, 0.3
        %vm1675 = vcmp.lt.f32.partialorder %v1604, 0.3
        %vm1676 = vcmp.lt.f32.partialorder %v1606, 0.3
        %vm1677 = vcmp.lt.f32.partialorder %v1608, 0.3
        %vm1678 = vcmp.lt.f32.partialorder %v1610, 0.3
        %v1679 = vsel %vm1672, 1.0, 0.0
        %v1680 = vsel %vm1673, 1.0, 0.0
        %v1681 = vsel %vm1674, 1.0, 0.0
        %v1682 = vsel %vm1675, 1.0, 0.0
        %v1683 = vsel %vm1676, 1.0, 0.0
        %v1684 = vsel %vm1677, 1.0, 0.0
        %v1685 = vsel %vm1678, 1.0, 0.0
        %s1686 = scalar_lea.vmem %s270, 112
        %1687 = vst [vmem:[%s1686] sm:$0xff] %v1679
        %1688 = vst [vmem:[%s1686 + $0x8] sm:$0xff] %v1680
        %1689 = vst [vmem:[%s1686 + $0x10] sm:$0xff] %v1681
        %1690 = vst [vmem:[%s1686 + $0x18] sm:$0xff] %v1682
        %1691 = vst [vmem:[%s1686 + $0x20] sm:$0xff] %v1683
        %1692 = vst [vmem:[%s1686 + $0x28] sm:$0xff] %v1684
        %1693 = vst [vmem:[%s1686 + $0x30] sm:$0xff] %v1685
      $region44: #{a_call__.1} parent=39 // pred_fallthru
        _
      %s1694 = smul.u32 26, %s18
      %p1695 = scmp.lt.s32.totalorder %s1694, 51
      %s1696 = scalar_select %p1695, %s1694, 51
      %s1697 = smul.addr %s1696, 4
      %s1698 = scalar_lea.vmem %s5, %s1697
      %p1699 = scmp.lt.s32.totalorder %s18, 1
      %s1700 = scalar_select %p1699, %s18, 1
      %s1701 = smul.addr %s1700, 21
      %s1702 = smul.addr %s1701, 8
      %s1703 = scalar_lea.vmem %s6, %s1702
      // Predicated region
      $region45: #{a_call__.1} parent=39 // pred_check
        %p1704 = pneg %p146
      $region46: #{a_call__.1} parent=39 // pred_check_branch
        %1706 = sbr.rel (%p1704) target = $region48
      $region47: #{a_call__.1} parent=39 // pred_region
        %s1707 = smul.u32 26, %s18
      $region48: #{a_call__.1} parent=39 // pred_fallthru
        _
      // Predicated region
      $region49: #{a_call__.1} parent=39 // pred_check
        %p1708 = pneg %p172
      $region50: #{a_call__.1} parent=39 // pred_check_branch
        %1710 = sbr.rel (%p1708) target = $region52
      $region51: #{a_call__.1} parent=39 // pred_region
        _
      $region52: #{a_call__.1} parent=39 // pred_fallthru
        _
    $region40: #{a_call__.1} parent=5 // pred_fallthru
      _
    %p1711 = scmp.le.s32.totalorder 2, %s13
    // Predicated region
    $region53: #{a_call__.1} parent=5 // pred_check
      %p1712 = pneg %p1711
    $region54: #{a_call__.1} parent=5 // pred_check_branch
      %1714 = sbr.rel (%p1712) target = $region56
    $region55: #{a_call__.1} parent=5 // pred_region
      %s1715 = ssub.s32 %s13, 2
      // Predicated region
      $region57: #{a_call__.1} parent=55 // pred_check
        %p1716 = pneg %p152
      $region58: #{a_call__.1} parent=55 // pred_check_branch
        %1718 = sbr.rel (%p1716) target = $region60
      $region59: #{a_call__.1} parent=55 // pred_region
        %s1719 = smul.u32 26, %s19
        %p1720 = scmp.lt.s32.totalorder %s1719, 51
        %s1721 = scalar_select %p1720, %s1719, 51
        %s1722 = smul.addr %s1721, 4
        %s1723 = scalar_lea.vmem %s5, %s1722
      $region60: #{a_call__.1} parent=55 // pred_fallthru
        _
      // Predicated region
      $region61: #{a_call__.1} parent=55 // pred_check
        %p1724 = pneg %p178
      $region62: #{a_call__.1} parent=55 // pred_check_branch
        %1726 = sbr.rel (%p1724) target = $region64
      $region63: #{a_call__.1} parent=55 // pred_region
        %p1727 = scmp.lt.s32.totalorder %s19, 1
        %s1728 = scalar_select %p1727, %s19, 1
        %s1729 = smul.addr %s1728, 21
        %s1730 = smul.addr %s1729, 8
        %s1731 = scalar_lea.vmem %s6, %s1730
      $region64: #{a_call__.1} parent=55 // pred_fallthru
        _
    $region56: #{a_call__.1} parent=5 // pred_fallthru
      _
  $region6: #{a_call__.1} parent=0 // loop_footer
    %s17 = sadd.s32 1, %s13
  $region7: #{a_call__.1} parent=0 // loop_footer_branch
    %12 = sbr.rel target = $region3
  $region8: #{a_call__.1} parent=0 // loop_exit
    _

</llo_original>
